<compile_context>
chip_gen: v5e
topology: v5e:2x2
jax: 0.10.0
libtpu: 0.0.40
codegen_flags: <defaults>
</compile_context>

<pallas_src>
import jax
import jax.numpy as jnp
from jax.experimental import pallas as pl
from jax.experimental.pallas import tpu as pltpu


# ----------------------------------------------------------------------------
# Fused Pallas kernel
# ----------------------------------------------------------------------------
def inception_aux_fused_kernel(x_ref, wc_ref, scale_ref, shift_ref,
                               w1_ref, b1_ref, w2_ref, b2_ref,
                               o_ref, h_ref):
    # x_ref:     (16*N, Cin)   pooled pixels, rows ordered (hw, n)
    # wc_ref:    (Cin, 128)    1x1 conv weight (transposed)
    # scale/shift: (1, 128)    eval-mode BatchNorm folded to an affine
    # w1_ref:    (16, 128, TN) fc1 weight tile, flatten permutation pre-folded
    # b1_ref:    (1, TN)       fc1 bias tile
    # w2_ref:    (TN, 128)     fc2 weight tile (output lane-padded to 128)
    # b2_ref:    (1, 128)      fc2 bias (lane-padded)
    # o_ref:     (N, 128)      accumulated fc2 output (revisited every step)
    # h_ref:     (16*N, 128)   VMEM scratch: conv+BN+ReLU activation
    k = pl.program_id(0)
    n = o_ref.shape[0]

    @pl.when(k == 0)
    def _():
        # 1x1 conv as a channel matmul + folded BN affine + ReLU (once).
        y = jnp.dot(x_ref[...], wc_ref[...], preferred_element_type=jnp.float32)
        h_ref[...] = jnp.maximum(y * scale_ref[...] + shift_ref[...], 0.0)
        # Initialize the fc2 accumulator with its bias.
        o_ref[...] = jnp.broadcast_to(b2_ref[...], o_ref.shape)

    # fc1 column tile: contract over 2048 = 16(hw) x 128(c), flatten order
    # already folded into w1 -> no activation reshape/transpose needed.
    h = h_ref[...]                                        # (16*N, 128)
    a = jnp.zeros((n, b1_ref.shape[1]), jnp.float32)
    for hw in range(16):                                   # static unroll
        a += jnp.dot(h[hw * n:(hw + 1) * n, :],
                     w1_ref[hw].astype(jnp.float32),
                     preferred_element_type=jnp.float32)
    a = jnp.maximum(a + b1_ref[...], 0.0)                  # fc1 bias + ReLU
    # dropout == identity in eval mode
    # Partial fc2: accumulate this column tile's contribution.
    o_ref[...] += jnp.dot(a, w2_ref[...].astype(jnp.float32),
                          preferred_element_type=jnp.float32)


# ----------------------------------------------------------------------------
# Glue
# ----------------------------------------------------------------------------
def adaptive_max_pool2d_4x4_hwnc(x):
    """Exact F.adaptive_max_pool2d(x, (4, 4)) semantics on NCHW input,
    emitted directly as (4, 4, N, C) so no transpose is needed downstream."""
    N, C, H, W = x.shape
    rows = []
    for i in range(4):
        hs, he = (i * H) // 4, -((-(i + 1) * H) // 4)
        cols = []
        for j in range(4):
            ws, we = (j * W) // 4, -((-(j + 1) * W) // 4)
            cols.append(jnp.max(x[:, :, hs:he, ws:we], axis=(2, 3)))  # (N, C)
        rows.append(jnp.stack(cols, axis=0))                          # (4, N, C)
    return jnp.stack(rows, axis=0)                                    # (4, 4, N, C)


def init_params(key, in_channels, num_classes):
    ks = jax.random.split(key, 8)
    return {
        "conv_w": 0.1 * jax.random.normal(ks[0], (128, in_channels, 1, 1), jnp.float32),
        "bn_gamma": 1.0 + 0.1 * jax.random.normal(ks[1], (128,), jnp.float32),
        "bn_beta": 0.1 * jax.random.normal(ks[2], (128,), jnp.float32),
        "bn_mean": 0.05 * jax.random.normal(ks[3], (128,), jnp.float32),
        "bn_var": 0.5 + jax.random.uniform(ks[4], (128,), jnp.float32),
        "fc1_w": 0.02 * jax.random.normal(ks[5], (1024, 2048), jnp.float32),
        "fc1_b": 0.01 * jax.random.normal(ks[6], (1024,), jnp.float32),
        "fc2_w": 0.05 * jax.random.normal(ks[7], (num_classes, 1024), jnp.float32),
        "fc2_b": jnp.linspace(-0.1, 0.1, num_classes, dtype=jnp.float32),
    }


def inception_aux_forward(x, params, num_classes):
    N, Cin, H, W = x.shape
    eps = 1e-3
    TN = 256                      # fc1 output-column tile (streamed / pipelined)
    n_tiles = 1024 // TN

    # --- adaptive max pool to (4,4), already in (hw, n) row order ----------
    pooled = adaptive_max_pool2d_4x4_hwnc(x)          # (4, 4, N, Cin)
    xr = pooled.reshape(16 * N, Cin)                  # rows ordered (hw, n)

    # --- fold conv weight + eval-mode BatchNorm into matmul + affine -------
    wc = params["conv_w"].reshape(128, Cin).T                        # (Cin, 128)
    scale = (params["bn_gamma"] / jnp.sqrt(params["bn_var"] + eps)).reshape(1, 128)
    shift = params["bn_beta"].reshape(1, 128) - params["bn_mean"].reshape(1, 128) * scale

    # --- fold torch.flatten(x, 1) (index c*16 + hw) into the fc1 weight ----
    # w1_3d[hw, c, j] = fc1_w[j, c*16 + hw]; stored bf16 (halves HBM traffic).
    w1_3d = params["fc1_w"].reshape(1024, 128, 16).transpose(2, 1, 0)
    w1_3d = w1_3d.astype(jnp.bfloat16)                               # (16, 128, 1024)
    b1 = params["fc1_b"].reshape(1, 1024)

    # --- fc2 weight transposed, lane-padded to 128 output columns ----------
    w2p = jnp.zeros((1024, 128), jnp.float32).at[:, :num_classes].set(params["fc2_w"].T)
    w2p = w2p.astype(jnp.bfloat16)
    b2p = jnp.zeros((1, 128), jnp.float32).at[:, :num_classes].set(params["fc2_b"])

    out_padded = pl.pallas_call(
        inception_aux_fused_kernel,
        out_shape=jax.ShapeDtypeStruct((N, 128), jnp.float32),
        grid=(n_tiles,),
        in_specs=[
            pl.BlockSpec((16 * N, Cin), lambda k: (0, 0)),       # pooled pixels
            pl.BlockSpec((Cin, 128), lambda k: (0, 0)),          # conv weight
            pl.BlockSpec((1, 128), lambda k: (0, 0)),            # BN scale
            pl.BlockSpec((1, 128), lambda k: (0, 0)),            # BN shift
            pl.BlockSpec((16, 128, TN), lambda k: (0, 0, k)),    # fc1 weight tile
            pl.BlockSpec((1, TN), lambda k: (0, k)),             # fc1 bias tile
            pl.BlockSpec((TN, 128), lambda k: (k, 0)),           # fc2 weight tile
            pl.BlockSpec((1, 128), lambda k: (0, 0)),            # fc2 bias
        ],
        out_specs=pl.BlockSpec((N, 128), lambda k: (0, 0)),
        scratch_shapes=[pltpu.VMEM((16 * N, 128), jnp.float32)],
        compiler_params=pltpu.CompilerParams(
            dimension_semantics=("arbitrary",),   # fc2 reduction over column tiles
            vmem_limit_bytes=32 * 1024 * 1024,
        ),
    )(xr, wc, scale, shift, w1_3d, b1, w2p, b2p)

    return out_padded[:, :num_classes]


def reference_forward(x, params, num_classes):
    """Pure-JAX reference mirroring the PyTorch forward (eval mode)."""
    eps = 1e-3
    hp = jax.lax.Precision.HIGHEST
    xp = jnp.transpose(adaptive_max_pool2d_4x4_hwnc(x), (2, 3, 0, 1))  # (N, C, 4, 4)
    w = params["conv_w"].reshape(128, -1)
    conv = jnp.einsum("nchw,kc->nkhw", xp, w, precision=hp)
    scale = params["bn_gamma"] / jnp.sqrt(params["bn_var"] + eps)
    y = (conv - params["bn_mean"][None, :, None, None]) * scale[None, :, None, None] \
        + params["bn_beta"][None, :, None, None]
    y = jnp.maximum(y, 0.0)
    flat = y.reshape(y.shape[0], -1)                                   # torch.flatten order
    a = jnp.maximum(jnp.dot(flat, params["fc1_w"].T, precision=hp) + params["fc1_b"], 0.0)
    # dropout is identity in eval mode
    return jnp.dot(a, params["fc2_w"].T, precision=hp) + params["fc2_b"]


if __name__ == "__main__":
    N, C_IN, H, W = 2, 4, 16, 16
    NUM_CLASSES = 10

    key = jax.random.PRNGKey(0)
    kx, kp = jax.random.split(key)
    x = jax.random.normal(kx, (N, C_IN, H, W), jnp.float32)
    params = init_params(kp, C_IN, NUM_CLASSES)

    out = inception_aux_forward(x, params, NUM_CLASSES)
    out = jax.block_until_ready(out)

    ref = reference_forward(x, params, NUM_CLASSES)
    assert out.shape == (N, NUM_CLASSES)
    assert jnp.allclose(out, ref, rtol=1e-2, atol=1e-2), "mismatch vs reference"

    print("KERNEL_OK")
</pallas_src>

<mosaic_0001>
module attributes {stable_mosaic.version = 11 : i64} {
  func.func @inception_aux_fused_kernel(%arg0: i32, %arg1: memref<32x4xf32, #tpu.memory_space<vmem>>, %arg2: memref<4x128xf32, #tpu.memory_space<vmem>>, %arg3: memref<1x128xf32, #tpu.memory_space<vmem>>, %arg4: memref<1x128xf32, #tpu.memory_space<vmem>>, %arg5: memref<16x128x256xbf16, #tpu.memory_space<vmem>>, %arg6: memref<1x256xf32, #tpu.memory_space<vmem>>, %arg7: memref<256x128xbf16, #tpu.memory_space<vmem>>, %arg8: memref<1x128xf32, #tpu.memory_space<vmem>>, %arg9: memref<2x128xf32, #tpu.memory_space<vmem>>, %arg10: memref<32x128xf32, #tpu.memory_space<vmem>>) attributes {dimension_semantics = [#tpu.dimension_semantics<arbitrary>], iteration_bounds = array<i64: 4>, scalar_prefetch = 0 : i64, scratch_operands = 1 : i64, tpu.core_type = #tpu.core_type<tc>, window_params = [{pipeline_mode = #tpu.pipeline_mode<synchronous>, transform_indices = @transform_0, window_bounds = array<i64: 32, 4>}, {pipeline_mode = #tpu.pipeline_mode<synchronous>, transform_indices = @transform_1, window_bounds = array<i64: 4, 128>}, {pipeline_mode = #tpu.pipeline_mode<synchronous>, transform_indices = @transform_2, window_bounds = array<i64: 1, 128>}, {pipeline_mode = #tpu.pipeline_mode<synchronous>, transform_indices = @transform_3, window_bounds = array<i64: 1, 128>}, {transform_indices = @transform_4, window_bounds = array<i64: 16, 128, 256>}, {transform_indices = @transform_5, window_bounds = array<i64: 1, 256>}, {transform_indices = @transform_6, window_bounds = array<i64: 256, 128>}, {pipeline_mode = #tpu.pipeline_mode<synchronous>, transform_indices = @transform_7, window_bounds = array<i64: 1, 128>}, {pipeline_mode = #tpu.pipeline_mode<synchronous>, transform_indices = @transform_8, window_bounds = array<i64: 2, 128>}]} {
    %c0_i32 = arith.constant 0 : i32
    %0 = arith.cmpi eq, %arg0, %c0_i32 : i32
    %1 = arith.extui %0 : i1 to i32
    %c0_i32_0 = arith.constant 0 : i32
    %2 = arith.cmpi ne, %1, %c0_i32_0 : i32
    scf.if %2 {
      %c0_61 = arith.constant 0 : index
      %c0_62 = arith.constant 0 : index
      %112 = vector.load %arg1[%c0_61, %c0_62] : memref<32x4xf32, #tpu.memory_space<vmem>>, vector<32x4xf32>
      %c0_63 = arith.constant 0 : index
      %c0_64 = arith.constant 0 : index
      %113 = vector.load %arg2[%c0_63, %c0_64] : memref<4x128xf32, #tpu.memory_space<vmem>>, vector<4x128xf32>
      %cst_65 = arith.constant dense<0.000000e+00> : vector<32x128xf32>
      %114 = tpu.matmul %112, %113, %cst_65 {dimension_numbers = #tpu.dot_dimension_numbers<[1], [0], [0], [1], [0, 0, 1, 1], [], []>} : vector<32x4xf32>, vector<4x128xf32>, vector<32x128xf32> -> vector<32x128xf32>
      %c0_66 = arith.constant 0 : index
      %c0_67 = arith.constant 0 : index
      %115 = vector.load %arg3[%c0_66, %c0_67] : memref<1x128xf32, #tpu.memory_space<vmem>>, vector<1x128xf32>
      %116 = vector.broadcast %115 : vector<1x128xf32> to vector<32x128xf32>
      %117 = arith.mulf %114, %116 : vector<32x128xf32>
      %c0_68 = arith.constant 0 : index
      %c0_69 = arith.constant 0 : index
      %118 = vector.load %arg4[%c0_68, %c0_69] : memref<1x128xf32, #tpu.memory_space<vmem>>, vector<1x128xf32>
      %119 = vector.broadcast %118 : vector<1x128xf32> to vector<32x128xf32>
      %120 = arith.addf %117, %119 : vector<32x128xf32>
      %cst_70 = arith.constant 0.000000e+00 : f32
      %121 = vector.broadcast %cst_70 : f32 to vector<32x128xf32>
      %122 = arith.maximumf %120, %121 : vector<32x128xf32>
      %c0_71 = arith.constant 0 : index
      %c0_72 = arith.constant 0 : index
      %123 = vector.load %arg10[%c0_71, %c0_72] : memref<32x128xf32, #tpu.memory_space<vmem>>, vector<32x128xf32>
      tpu.vector_store %arg10[%c0_71, %c0_72], %122 {strides = array<i32>} : memref<32x128xf32, #tpu.memory_space<vmem>>, vector<32x128xf32>,
      %c0_73 = arith.constant 0 : index
      %c0_74 = arith.constant 0 : index
      %124 = vector.load %arg8[%c0_73, %c0_74] : memref<1x128xf32, #tpu.memory_space<vmem>>, vector<1x128xf32>
      %125 = vector.shape_cast %124 : vector<1x128xf32> to vector<1x128xf32>
      %126 = vector.broadcast %125 : vector<1x128xf32> to vector<2x128xf32>
      %c0_75 = arith.constant 0 : index
      %c0_76 = arith.constant 0 : index
      %127 = vector.load %arg9[%c0_75, %c0_76] : memref<2x128xf32, #tpu.memory_space<vmem>>, vector<2x128xf32>
      tpu.vector_store %arg9[%c0_75, %c0_76], %126 {strides = array<i32>} : memref<2x128xf32, #tpu.memory_space<vmem>>, vector<2x128xf32>,
    } else {
    }
    %c0 = arith.constant 0 : index
    %c0_1 = arith.constant 0 : index
    %3 = vector.load %arg10[%c0, %c0_1] : memref<32x128xf32, #tpu.memory_space<vmem>>, vector<32x128xf32>
    %cst = arith.constant 0.000000e+00 : f32
    %4 = vector.broadcast %cst : f32 to vector<2x256xf32>
    %5 = vector.extract_strided_slice %3 {offsets = [0, 0], sizes = [2, 128], strides = [1, 1]} : vector<32x128xf32> to vector<2x128xf32>
    %c0_2 = arith.constant 0 : index
    %c0_3 = arith.constant 0 : index
    %c0_4 = arith.constant 0 : index
    %6 = vector.load %arg5[%c0_2, %c0_3, %c0_4] : memref<16x128x256xbf16, #tpu.memory_space<vmem>>, vector<1x128x256xbf16>
    %7 = vector.shape_cast %6 : vector<1x128x256xbf16> to vector<128x256xbf16>
    %8 = arith.extf %7 : vector<128x256xbf16> to vector<128x256xf32>
    %cst_5 = arith.constant dense<0.000000e+00> : vector<2x256xf32>
    %9 = tpu.matmul %5, %8, %cst_5 {dimension_numbers = #tpu.dot_dimension_numbers<[1], [0], [0], [1], [0, 0, 1, 1], [], []>} : vector<2x128xf32>, vector<128x256xf32>, vector<2x256xf32> -> vector<2x256xf32>
    %10 = arith.addf %4, %9 : vector<2x256xf32>
    %11 = vector.extract_strided_slice %3 {offsets = [2, 0], sizes = [2, 128], strides = [1, 1]} : vector<32x128xf32> to vector<2x128xf32>
    %c1 = arith.constant 1 : index
    %c0_6 = arith.constant 0 : index
    %c0_7 = arith.constant 0 : index
    %12 = vector.load %arg5[%c1, %c0_6, %c0_7] : memref<16x128x256xbf16, #tpu.memory_space<vmem>>, vector<1x128x256xbf16>
    %13 = vector.shape_cast %12 : vector<1x128x256xbf16> to vector<128x256xbf16>
    %14 = arith.extf %13 : vector<128x256xbf16> to vector<128x256xf32>
    %cst_8 = arith.constant dense<0.000000e+00> : vector<2x256xf32>
    %15 = tpu.matmul %11, %14, %cst_8 {dimension_numbers = #tpu.dot_dimension_numbers<[1], [0], [0], [1], [0, 0, 1, 1], [], []>} : vector<2x128xf32>, vector<128x256xf32>, vector<2x256xf32> -> vector<2x256xf32>
    %16 = arith.addf %10, %15 : vector<2x256xf32>
    %17 = vector.extract_strided_slice %3 {offsets = [4, 0], sizes = [2, 128], strides = [1, 1]} : vector<32x128xf32> to vector<2x128xf32>
    %c2 = arith.constant 2 : index
    %c0_9 = arith.constant 0 : index
    %c0_10 = arith.constant 0 : index
    %18 = vector.load %arg5[%c2, %c0_9, %c0_10] : memref<16x128x256xbf16, #tpu.memory_space<vmem>>, vector<1x128x256xbf16>
    %19 = vector.shape_cast %18 : vector<1x128x256xbf16> to vector<128x256xbf16>
    %20 = arith.extf %19 : vector<128x256xbf16> to vector<128x256xf32>
    %cst_11 = arith.constant dense<0.000000e+00> : vector<2x256xf32>
    %21 = tpu.matmul %17, %20, %cst_11 {dimension_numbers = #tpu.dot_dimension_numbers<[1], [0], [0], [1], [0, 0, 1, 1], [], []>} : vector<2x128xf32>, vector<128x256xf32>, vector<2x256xf32> -> vector<2x256xf32>
    %22 = arith.addf %16, %21 : vector<2x256xf32>
    %23 = vector.extract_strided_slice %3 {offsets = [6, 0], sizes = [2, 128], strides = [1, 1]} : vector<32x128xf32> to vector<2x128xf32>
    %c3 = arith.constant 3 : index
    %c0_12 = arith.constant 0 : index
    %c0_13 = arith.constant 0 : index
    %24 = vector.load %arg5[%c3, %c0_12, %c0_13] : memref<16x128x256xbf16, #tpu.memory_space<vmem>>, vector<1x128x256xbf16>
    %25 = vector.shape_cast %24 : vector<1x128x256xbf16> to vector<128x256xbf16>
    %26 = arith.extf %25 : vector<128x256xbf16> to vector<128x256xf32>
    %cst_14 = arith.constant dense<0.000000e+00> : vector<2x256xf32>
    %27 = tpu.matmul %23, %26, %cst_14 {dimension_numbers = #tpu.dot_dimension_numbers<[1], [0], [0], [1], [0, 0, 1, 1], [], []>} : vector<2x128xf32>, vector<128x256xf32>, vector<2x256xf32> -> vector<2x256xf32>
    %28 = arith.addf %22, %27 : vector<2x256xf32>
    %29 = vector.extract_strided_slice %3 {offsets = [8, 0], sizes = [2, 128], strides = [1, 1]} : vector<32x128xf32> to vector<2x128xf32>
    %c4 = arith.constant 4 : index
    %c0_15 = arith.constant 0 : index
    %c0_16 = arith.constant 0 : index
    %30 = vector.load %arg5[%c4, %c0_15, %c0_16] : memref<16x128x256xbf16, #tpu.memory_space<vmem>>, vector<1x128x256xbf16>
    %31 = vector.shape_cast %30 : vector<1x128x256xbf16> to vector<128x256xbf16>
    %32 = arith.extf %31 : vector<128x256xbf16> to vector<128x256xf32>
    %cst_17 = arith.constant dense<0.000000e+00> : vector<2x256xf32>
    %33 = tpu.matmul %29, %32, %cst_17 {dimension_numbers = #tpu.dot_dimension_numbers<[1], [0], [0], [1], [0, 0, 1, 1], [], []>} : vector<2x128xf32>, vector<128x256xf32>, vector<2x256xf32> -> vector<2x256xf32>
    %34 = arith.addf %28, %33 : vector<2x256xf32>
    %35 = vector.extract_strided_slice %3 {offsets = [10, 0], sizes = [2, 128], strides = [1, 1]} : vector<32x128xf32> to vector<2x128xf32>
    %c5 = arith.constant 5 : index
    %c0_18 = arith.constant 0 : index
    %c0_19 = arith.constant 0 : index
    %36 = vector.load %arg5[%c5, %c0_18, %c0_19] : memref<16x128x256xbf16, #tpu.memory_space<vmem>>, vector<1x128x256xbf16>
    %37 = vector.shape_cast %36 : vector<1x128x256xbf16> to vector<128x256xbf16>
    %38 = arith.extf %37 : vector<128x256xbf16> to vector<128x256xf32>
    %cst_20 = arith.constant dense<0.000000e+00> : vector<2x256xf32>
    %39 = tpu.matmul %35, %38, %cst_20 {dimension_numbers = #tpu.dot_dimension_numbers<[1], [0], [0], [1], [0, 0, 1, 1], [], []>} : vector<2x128xf32>, vector<128x256xf32>, vector<2x256xf32> -> vector<2x256xf32>
    %40 = arith.addf %34, %39 : vector<2x256xf32>
    %41 = vector.extract_strided_slice %3 {offsets = [12, 0], sizes = [2, 128], strides = [1, 1]} : vector<32x128xf32> to vector<2x128xf32>
    %c6 = arith.constant 6 : index
    %c0_21 = arith.constant 0 : index
    %c0_22 = arith.constant 0 : index
    %42 = vector.load %arg5[%c6, %c0_21, %c0_22] : memref<16x128x256xbf16, #tpu.memory_space<vmem>>, vector<1x128x256xbf16>
    %43 = vector.shape_cast %42 : vector<1x128x256xbf16> to vector<128x256xbf16>
    %44 = arith.extf %43 : vector<128x256xbf16> to vector<128x256xf32>
    %cst_23 = arith.constant dense<0.000000e+00> : vector<2x256xf32>
    %45 = tpu.matmul %41, %44, %cst_23 {dimension_numbers = #tpu.dot_dimension_numbers<[1], [0], [0], [1], [0, 0, 1, 1], [], []>} : vector<2x128xf32>, vector<128x256xf32>, vector<2x256xf32> -> vector<2x256xf32>
    %46 = arith.addf %40, %45 : vector<2x256xf32>
    %47 = vector.extract_strided_slice %3 {offsets = [14, 0], sizes = [2, 128], strides = [1, 1]} : vector<32x128xf32> to vector<2x128xf32>
    %c7 = arith.constant 7 : index
    %c0_24 = arith.constant 0 : index
    %c0_25 = arith.constant 0 : index
    %48 = vector.load %arg5[%c7, %c0_24, %c0_25] : memref<16x128x256xbf16, #tpu.memory_space<vmem>>, vector<1x128x256xbf16>
    %49 = vector.shape_cast %48 : vector<1x128x256xbf16> to vector<128x256xbf16>
    %50 = arith.extf %49 : vector<128x256xbf16> to vector<128x256xf32>
    %cst_26 = arith.constant dense<0.000000e+00> : vector<2x256xf32>
    %51 = tpu.matmul %47, %50, %cst_26 {dimension_numbers = #tpu.dot_dimension_numbers<[1], [0], [0], [1], [0, 0, 1, 1], [], []>} : vector<2x128xf32>, vector<128x256xf32>, vector<2x256xf32> -> vector<2x256xf32>
    %52 = arith.addf %46, %51 : vector<2x256xf32>
    %53 = vector.extract_strided_slice %3 {offsets = [16, 0], sizes = [2, 128], strides = [1, 1]} : vector<32x128xf32> to vector<2x128xf32>
    %c8 = arith.constant 8 : index
    %c0_27 = arith.constant 0 : index
    %c0_28 = arith.constant 0 : index
    %54 = vector.load %arg5[%c8, %c0_27, %c0_28] : memref<16x128x256xbf16, #tpu.memory_space<vmem>>, vector<1x128x256xbf16>
    %55 = vector.shape_cast %54 : vector<1x128x256xbf16> to vector<128x256xbf16>
    %56 = arith.extf %55 : vector<128x256xbf16> to vector<128x256xf32>
    %cst_29 = arith.constant dense<0.000000e+00> : vector<2x256xf32>
    %57 = tpu.matmul %53, %56, %cst_29 {dimension_numbers = #tpu.dot_dimension_numbers<[1], [0], [0], [1], [0, 0, 1, 1], [], []>} : vector<2x128xf32>, vector<128x256xf32>, vector<2x256xf32> -> vector<2x256xf32>
    %58 = arith.addf %52, %57 : vector<2x256xf32>
    %59 = vector.extract_strided_slice %3 {offsets = [18, 0], sizes = [2, 128], strides = [1, 1]} : vector<32x128xf32> to vector<2x128xf32>
    %c9 = arith.constant 9 : index
    %c0_30 = arith.constant 0 : index
    %c0_31 = arith.constant 0 : index
    %60 = vector.load %arg5[%c9, %c0_30, %c0_31] : memref<16x128x256xbf16, #tpu.memory_space<vmem>>, vector<1x128x256xbf16>
    %61 = vector.shape_cast %60 : vector<1x128x256xbf16> to vector<128x256xbf16>
    %62 = arith.extf %61 : vector<128x256xbf16> to vector<128x256xf32>
    %cst_32 = arith.constant dense<0.000000e+00> : vector<2x256xf32>
    %63 = tpu.matmul %59, %62, %cst_32 {dimension_numbers = #tpu.dot_dimension_numbers<[1], [0], [0], [1], [0, 0, 1, 1], [], []>} : vector<2x128xf32>, vector<128x256xf32>, vector<2x256xf32> -> vector<2x256xf32>
    %64 = arith.addf %58, %63 : vector<2x256xf32>
    %65 = vector.extract_strided_slice %3 {offsets = [20, 0], sizes = [2, 128], strides = [1, 1]} : vector<32x128xf32> to vector<2x128xf32>
    %c10 = arith.constant 10 : index
    %c0_33 = arith.constant 0 : index
    %c0_34 = arith.constant 0 : index
    %66 = vector.load %arg5[%c10, %c0_33, %c0_34] : memref<16x128x256xbf16, #tpu.memory_space<vmem>>, vector<1x128x256xbf16>
    %67 = vector.shape_cast %66 : vector<1x128x256xbf16> to vector<128x256xbf16>
    %68 = arith.extf %67 : vector<128x256xbf16> to vector<128x256xf32>
    %cst_35 = arith.constant dense<0.000000e+00> : vector<2x256xf32>
    %69 = tpu.matmul %65, %68, %cst_35 {dimension_numbers = #tpu.dot_dimension_numbers<[1], [0], [0], [1], [0, 0, 1, 1], [], []>} : vector<2x128xf32>, vector<128x256xf32>, vector<2x256xf32> -> vector<2x256xf32>
    %70 = arith.addf %64, %69 : vector<2x256xf32>
    %71 = vector.extract_strided_slice %3 {offsets = [22, 0], sizes = [2, 128], strides = [1, 1]} : vector<32x128xf32> to vector<2x128xf32>
    %c11 = arith.constant 11 : index
    %c0_36 = arith.constant 0 : index
    %c0_37 = arith.constant 0 : index
    %72 = vector.load %arg5[%c11, %c0_36, %c0_37] : memref<16x128x256xbf16, #tpu.memory_space<vmem>>, vector<1x128x256xbf16>
    %73 = vector.shape_cast %72 : vector<1x128x256xbf16> to vector<128x256xbf16>
    %74 = arith.extf %73 : vector<128x256xbf16> to vector<128x256xf32>
    %cst_38 = arith.constant dense<0.000000e+00> : vector<2x256xf32>
    %75 = tpu.matmul %71, %74, %cst_38 {dimension_numbers = #tpu.dot_dimension_numbers<[1], [0], [0], [1], [0, 0, 1, 1], [], []>} : vector<2x128xf32>, vector<128x256xf32>, vector<2x256xf32> -> vector<2x256xf32>
    %76 = arith.addf %70, %75 : vector<2x256xf32>
    %77 = vector.extract_strided_slice %3 {offsets = [24, 0], sizes = [2, 128], strides = [1, 1]} : vector<32x128xf32> to vector<2x128xf32>
    %c12 = arith.constant 12 : index
    %c0_39 = arith.constant 0 : index
    %c0_40 = arith.constant 0 : index
    %78 = vector.load %arg5[%c12, %c0_39, %c0_40] : memref<16x128x256xbf16, #tpu.memory_space<vmem>>, vector<1x128x256xbf16>
    %79 = vector.shape_cast %78 : vector<1x128x256xbf16> to vector<128x256xbf16>
    %80 = arith.extf %79 : vector<128x256xbf16> to vector<128x256xf32>
    %cst_41 = arith.constant dense<0.000000e+00> : vector<2x256xf32>
    %81 = tpu.matmul %77, %80, %cst_41 {dimension_numbers = #tpu.dot_dimension_numbers<[1], [0], [0], [1], [0, 0, 1, 1], [], []>} : vector<2x128xf32>, vector<128x256xf32>, vector<2x256xf32> -> vector<2x256xf32>
    %82 = arith.addf %76, %81 : vector<2x256xf32>
    %83 = vector.extract_strided_slice %3 {offsets = [26, 0], sizes = [2, 128], strides = [1, 1]} : vector<32x128xf32> to vector<2x128xf32>
    %c13 = arith.constant 13 : index
    %c0_42 = arith.constant 0 : index
    %c0_43 = arith.constant 0 : index
    %84 = vector.load %arg5[%c13, %c0_42, %c0_43] : memref<16x128x256xbf16, #tpu.memory_space<vmem>>, vector<1x128x256xbf16>
    %85 = vector.shape_cast %84 : vector<1x128x256xbf16> to vector<128x256xbf16>
    %86 = arith.extf %85 : vector<128x256xbf16> to vector<128x256xf32>
    %cst_44 = arith.constant dense<0.000000e+00> : vector<2x256xf32>
    %87 = tpu.matmul %83, %86, %cst_44 {dimension_numbers = #tpu.dot_dimension_numbers<[1], [0], [0], [1], [0, 0, 1, 1], [], []>} : vector<2x128xf32>, vector<128x256xf32>, vector<2x256xf32> -> vector<2x256xf32>
    %88 = arith.addf %82, %87 : vector<2x256xf32>
    %89 = vector.extract_strided_slice %3 {offsets = [28, 0], sizes = [2, 128], strides = [1, 1]} : vector<32x128xf32> to vector<2x128xf32>
    %c14 = arith.constant 14 : index
    %c0_45 = arith.constant 0 : index
    %c0_46 = arith.constant 0 : index
    %90 = vector.load %arg5[%c14, %c0_45, %c0_46] : memref<16x128x256xbf16, #tpu.memory_space<vmem>>, vector<1x128x256xbf16>
    %91 = vector.shape_cast %90 : vector<1x128x256xbf16> to vector<128x256xbf16>
    %92 = arith.extf %91 : vector<128x256xbf16> to vector<128x256xf32>
    %cst_47 = arith.constant dense<0.000000e+00> : vector<2x256xf32>
    %93 = tpu.matmul %89, %92, %cst_47 {dimension_numbers = #tpu.dot_dimension_numbers<[1], [0], [0], [1], [0, 0, 1, 1], [], []>} : vector<2x128xf32>, vector<128x256xf32>, vector<2x256xf32> -> vector<2x256xf32>
    %94 = arith.addf %88, %93 : vector<2x256xf32>
    %95 = vector.extract_strided_slice %3 {offsets = [30, 0], sizes = [2, 128], strides = [1, 1]} : vector<32x128xf32> to vector<2x128xf32>
    %c15 = arith.constant 15 : index
    %c0_48 = arith.constant 0 : index
    %c0_49 = arith.constant 0 : index
    %96 = vector.load %arg5[%c15, %c0_48, %c0_49] : memref<16x128x256xbf16, #tpu.memory_space<vmem>>, vector<1x128x256xbf16>
    %97 = vector.shape_cast %96 : vector<1x128x256xbf16> to vector<128x256xbf16>
    %98 = arith.extf %97 : vector<128x256xbf16> to vector<128x256xf32>
    %cst_50 = arith.constant dense<0.000000e+00> : vector<2x256xf32>
    %99 = tpu.matmul %95, %98, %cst_50 {dimension_numbers = #tpu.dot_dimension_numbers<[1], [0], [0], [1], [0, 0, 1, 1], [], []>} : vector<2x128xf32>, vector<128x256xf32>, vector<2x256xf32> -> vector<2x256xf32>
    %100 = arith.addf %94, %99 : vector<2x256xf32>
    %c0_51 = arith.constant 0 : index
    %c0_52 = arith.constant 0 : index
    %101 = vector.load %arg6[%c0_51, %c0_52] : memref<1x256xf32, #tpu.memory_space<vmem>>, vector<1x256xf32>
    %102 = vector.broadcast %101 : vector<1x256xf32> to vector<2x256xf32>
    %103 = arith.addf %100, %102 : vector<2x256xf32>
    %cst_53 = arith.constant 0.000000e+00 : f32
    %104 = vector.broadcast %cst_53 : f32 to vector<2x256xf32>
    %105 = arith.maximumf %103, %104 : vector<2x256xf32>
    %c0_54 = arith.constant 0 : index
    %c0_55 = arith.constant 0 : index
    %106 = vector.load %arg9[%c0_54, %c0_55] : memref<2x128xf32, #tpu.memory_space<vmem>>, vector<2x128xf32>
    %c0_56 = arith.constant 0 : index
    %c0_57 = arith.constant 0 : index
    %107 = vector.load %arg7[%c0_56, %c0_57] : memref<256x128xbf16, #tpu.memory_space<vmem>>, vector<256x128xbf16>
    %108 = arith.extf %107 : vector<256x128xbf16> to vector<256x128xf32>
    %cst_58 = arith.constant dense<0.000000e+00> : vector<2x128xf32>
    %109 = tpu.matmul %105, %108, %cst_58 {dimension_numbers = #tpu.dot_dimension_numbers<[1], [0], [0], [1], [0, 0, 1, 1], [], []>} : vector<2x256xf32>, vector<256x128xf32>, vector<2x128xf32> -> vector<2x128xf32>
    %110 = arith.addf %106, %109 : vector<2x128xf32>
    %c0_59 = arith.constant 0 : index
    %c0_60 = arith.constant 0 : index
    %111 = vector.load %arg9[%c0_59, %c0_60] : memref<2x128xf32, #tpu.memory_space<vmem>>, vector<2x128xf32>
    tpu.vector_store %arg9[%c0_59, %c0_60], %110 {strides = array<i32>} : memref<2x128xf32, #tpu.memory_space<vmem>>, vector<2x128xf32>,
    return
  }
  func.func @transform_0(%arg0: i32) -> (i32, i32) {
    %c0_i32 = arith.constant 0 : i32
    %c0_i32_0 = arith.constant 0 : i32
    %c0_i32_1 = arith.constant 0 : i32
    return %c0_i32, %c0_i32_0 : i32, i32
  }
  func.func @transform_1(%arg0: i32) -> (i32, i32) {
    %c0_i32 = arith.constant 0 : i32
    %c0_i32_0 = arith.constant 0 : i32
    %c0_i32_1 = arith.constant 0 : i32
    return %c0_i32, %c0_i32_0 : i32, i32
  }
  func.func @transform_2(%arg0: i32) -> (i32, i32) {
    %c0_i32 = arith.constant 0 : i32
    %c0_i32_0 = arith.constant 0 : i32
    %c0_i32_1 = arith.constant 0 : i32
    return %c0_i32, %c0_i32_0 : i32, i32
  }
  func.func @transform_3(%arg0: i32) -> (i32, i32) {
    %c0_i32 = arith.constant 0 : i32
    %c0_i32_0 = arith.constant 0 : i32
    %c0_i32_1 = arith.constant 0 : i32
    return %c0_i32, %c0_i32_0 : i32, i32
  }
  func.func @transform_4(%arg0: i32) -> (i32, i32, i32) {
    %c0_i32 = arith.constant 0 : i32
    %c0_i32_0 = arith.constant 0 : i32
    %c0_i32_1 = arith.constant 0 : i32
    return %c0_i32, %c0_i32_0, %arg0 : i32, i32, i32
  }
  func.func @transform_5(%arg0: i32) -> (i32, i32) {
    %c0_i32 = arith.constant 0 : i32
    %c0_i32_0 = arith.constant 0 : i32
    return %c0_i32, %arg0 : i32, i32
  }
  func.func @transform_6(%arg0: i32) -> (i32, i32) {
    %c0_i32 = arith.constant 0 : i32
    %c0_i32_0 = arith.constant 0 : i32
    return %arg0, %c0_i32 : i32, i32
  }
  func.func @transform_7(%arg0: i32) -> (i32, i32) {
    %c0_i32 = arith.constant 0 : i32
    %c0_i32_0 = arith.constant 0 : i32
    %c0_i32_1 = arith.constant 0 : i32
    return %c0_i32, %c0_i32_0 : i32, i32
  }
  func.func @transform_8(%arg0: i32) -> (i32, i32) {
    %c0_i32 = arith.constant 0 : i32
    %c0_i32_0 = arith.constant 0 : i32
    %c0_i32_1 = arith.constant 0 : i32
    return %c0_i32, %c0_i32_0 : i32, i32
  }
}

</mosaic_0001>

<llo_original>
// kernel: tpu_custom_call.1
$region0: #{tpu_custom_call.1}
  #allocation0 [shape = 'u32[]', space=smem, size = 0x4, offset = 0x4, fixed_abs, tag = 'smem constant byte address 0x4 - core index']
  #allocation1 [shape = 'u32[72,128]{1,0:T(1,128)}', space=vmem, size = 0x9000, scoped, tag = 'internal scratch']
  #allocation2 [shape = 'f32[32,128]{1,0:T(8,128)}', space=vmem, size = 0x4000, scoped, tag = 'scratch operand']
  %s0 = inlined_call_operand.vmem [shape: f32[32,4], index: 0, kind: input, shape index: {}]
  %s1 = inlined_call_operand.hbm [shape: f32[4,128], index: 1, kind: input, shape index: {}]
  %s2 = inlined_call_operand.hbm [shape: f32[1,128], index: 2, kind: input, shape index: {}]
  %s3 = inlined_call_operand.hbm [shape: f32[1,128], index: 3, kind: input, shape index: {}]
  %s4 = inlined_call_operand.hbm [shape: bf16[16,128,1024], index: 4, kind: input, shape index: {}]
  %s5 = inlined_call_operand.hbm [shape: f32[1,1024], index: 5, kind: input, shape index: {}]
  %s6 = inlined_call_operand.hbm [shape: bf16[1024,128], index: 6, kind: input, shape index: {}]
  %s7 = inlined_call_operand.hbm [shape: f32[1,128], index: 7, kind: input, shape index: {}]
  %s8 = inlined_call_operand.hbm [shape: f32[2,128], index: 8, kind: output, shape index: {}]
  %s9 = sld [smem:[#allocation0]]
  $region97: #{tpu_custom_call.1} parent=0
    _
  %s11 = ssub.s32 1, %s9
  %s12 = scalar_select 0, %s11, %s9
  $region1: #{tpu_custom_call.1} parent=0
    #allocation3 [shape = 'u8[2048]{0}', space=vmem, size = 0x800, scoped, tag = 'input window, operand 1, single buffered']
    #allocation4 [shape = 's32[2]{0}', space=sflag, size = 0x8, scoped, tag = 'scoped memory for tpu_custom_call.1']
    #allocation5 [shape = 's32[2]{0}', space=sflag, size = 0x8, scoped, tag = 'scoped memory for tpu_custom_call.1']
    #allocation6 [shape = 'u8[512]{0}', space=vmem, size = 0x400, scoped, tag = 'input window, operand 2, single buffered']
    #allocation7 [shape = 's32[1]{0}', space=sflag, size = 0x4, scoped, tag = 'scoped memory for tpu_custom_call.1']
    #allocation8 [shape = 'u8[512]{0}', space=vmem, size = 0x400, scoped, tag = 'input window, operand 3, single buffered']
    #allocation9 [shape = 'u8[2097152]{0}', space=vmem, size = 0x200000, scoped, tag = 'input window, operand 4']
    #allocation10 [shape = 's32[2]{0}', space=sflag, size = 0x8, scoped, tag = 'scoped memory for tpu_custom_call.1']
    #allocation11 [shape = 'u8[2048]{0}', space=vmem, size = 0x800, scoped, tag = 'input window, operand 5']
    #allocation12 [shape = 'u8[131072]{0}', space=vmem, size = 0x20000, scoped, tag = 'input window, operand 6']
    #allocation13 [shape = 's32[2]{0}', space=sflag, size = 0x8, scoped, tag = 'scoped memory for tpu_custom_call.1']
    #allocation14 [shape = 'u8[512]{0}', space=vmem, size = 0x400, scoped, tag = 'input window, operand 7, single buffered']
    #allocation15 [shape = 'u8[1024]{0}', space=vmem, size = 0x400, scoped, tag = 'output window, operand 0, single buffered']
    %13 = vsyncpa [#allocation4], 0
    %14 = vsyncpa [#allocation7], 0
    %15 = vsyncpa [#allocation10], 0
    %s16 = scalar_lea.sflag [#allocation10], 1
    %17 = vsyncpa %s16, 0
    %18 = vsyncpa [#allocation13], 0
    %s19 = scalar_lea.sflag [#allocation13], 1
    %20 = vsyncpa %s19, 0
    %21 = vsyncpa [#allocation5], 0
    loop: start=0, step=1, limit=6
    $region2: #{tpu_custom_call.1} parent=1 // loop_pre_header
      _
    $region3: #{tpu_custom_call.1} parent=1 // loop_header
      %s23 = sphi 0, %s27
      %p24 = scmp.ge.s32.totalorder %s23, 6
      %s31 = sphi 0, %s31
      %s33 = sphi 0, %s31
      %s34 = sphi 0, %s33
      %s48 = sphi 0, %s34
      %s52 = sphi 0, %s52
      %s54 = sphi 0, %s52
      %s55 = sphi 0, %s54
      %s69 = sphi 0, %s55
      %s73 = sphi 0, %s73
      %s75 = sphi 0, %s73
      %s76 = sphi 0, %s75
      %s90 = sphi 0, %s76
      %s94 = sphi 0, %s94
      %s96 = sphi 0, %s94
      %s97 = sphi 0, %s96
      %s111 = sphi 0, %s97
      %s117 = sphi 0, %s119
      %s120 = sphi 0, %s117
      %s121 = sphi 0, %s120
      %s137 = sphi 0, %s121
      %s143 = sphi 0, %s145
      %s146 = sphi 0, %s143
      %s147 = sphi 0, %s146
      %s163 = sphi 0, %s147
      %s169 = sphi 0, %s171
      %s172 = sphi 0, %s169
      %s173 = sphi 0, %s172
      %s189 = sphi 0, %s173
      %s193 = sphi 0, %s193
      %s195 = sphi 0, %s193
      %s196 = sphi 0, %s195
      %s210 = sphi 0, %s196
      %s214 = sphi 0, %s214
      %s216 = sphi 0, %s214
      %s217 = sphi 0, %s216
      %s231 = sphi 0, %s217
    $region4: #{tpu_custom_call.1} parent=1 // loop_header_branch
      %26 = sbr.rel (%p24) target = $region8
    $region5: #{tpu_custom_call.1} parent=1 // loop_body
      %s28 = ssub.s32 %s23, 1
      %s29 = ssub.s32 %s23, 2
      %s30 = sadd.s32 %s23, 1
      %s32 = sadd.s32 %s31, 1
      %p35 = scmp.eq.s32.totalorder %s23, 3
      %p36 = scmp.ne.s32.totalorder %s31, %s33
      %p37 = scmp.eq.s32.totalorder %s23, 0
      %p38 = por %p36, %p37
      %p39 = scmp.ne.s32.totalorder %s31, %s33
      %p40 = scmp.eq.s32.totalorder %s28, 3
      %p41 = por %p39, %p40
      %p42 = scmp.ne.s32.totalorder %s33, %s34
      %p43 = scmp.eq.s32.totalorder %s28, 0
      %p44 = por %p42, %p43
      %p45 = scmp.ne.s32.totalorder %s33, %s34
      %p46 = scmp.eq.s32.totalorder %s29, 3
      %p47 = por %p45, %p46
      %p49 = scmp.ne.s32.totalorder %s34, %s48
      %p50 = scmp.eq.s32.totalorder %s29, 0
      %p51 = por %p49, %p50
      %s53 = sadd.s32 %s52, 1
      %p56 = scmp.eq.s32.totalorder %s23, 3
      %p57 = scmp.ne.s32.totalorder %s52, %s54
      %p58 = scmp.eq.s32.totalorder %s23, 0
      %p59 = por %p57, %p58
      %p60 = scmp.ne.s32.totalorder %s52, %s54
      %p61 = scmp.eq.s32.totalorder %s28, 3
      %p62 = por %p60, %p61
      %p63 = scmp.ne.s32.totalorder %s54, %s55
      %p64 = scmp.eq.s32.totalorder %s28, 0
      %p65 = por %p63, %p64
      %p66 = scmp.ne.s32.totalorder %s54, %s55
      %p67 = scmp.eq.s32.totalorder %s29, 3
      %p68 = por %p66, %p67
      %p70 = scmp.ne.s32.totalorder %s55, %s69
      %p71 = scmp.eq.s32.totalorder %s29, 0
      %p72 = por %p70, %p71
      %s74 = sadd.s32 %s73, 1
      %p77 = scmp.eq.s32.totalorder %s23, 3
      %p78 = scmp.ne.s32.totalorder %s73, %s75
      %p79 = scmp.eq.s32.totalorder %s23, 0
      %p80 = por %p78, %p79
      %p81 = scmp.ne.s32.totalorder %s73, %s75
      %p82 = scmp.eq.s32.totalorder %s28, 3
      %p83 = por %p81, %p82
      %p84 = scmp.ne.s32.totalorder %s75, %s76
      %p85 = scmp.eq.s32.totalorder %s28, 0
      %p86 = por %p84, %p85
      %p87 = scmp.ne.s32.totalorder %s75, %s76
      %p88 = scmp.eq.s32.totalorder %s29, 3
      %p89 = por %p87, %p88
      %p91 = scmp.ne.s32.totalorder %s76, %s90
      %p92 = scmp.eq.s32.totalorder %s29, 0
      %p93 = por %p91, %p92
      %s95 = sadd.s32 %s94, 1
      %p98 = scmp.eq.s32.totalorder %s23, 3
      %p99 = scmp.ne.s32.totalorder %s94, %s96
      %p100 = scmp.eq.s32.totalorder %s23, 0
      %p101 = por %p99, %p100
      %p102 = scmp.ne.s32.totalorder %s94, %s96
      %p103 = scmp.eq.s32.totalorder %s28, 3
      %p104 = por %p102, %p103
      %p105 = scmp.ne.s32.totalorder %s96, %s97
      %p106 = scmp.eq.s32.totalorder %s28, 0
      %p107 = por %p105, %p106
      %p108 = scmp.ne.s32.totalorder %s96, %s97
      %p109 = scmp.eq.s32.totalorder %s29, 3
      %p110 = por %p108, %p109
      %p112 = scmp.ne.s32.totalorder %s97, %s111
      %p113 = scmp.eq.s32.totalorder %s29, 0
      %p114 = por %p112, %p113
      %s115 = ssub.s32 %s23, %s30
      %p116 = scmp.eq.s32.totalorder %s115, 0
      %s118 = sadd.s32 %s117, 1
      %s119 = scalar_select %p116, %s117, %s118
      %p122 = pneg %p116
      %p123 = scmp.eq.s32.totalorder %s23, 3
      %p124 = por %p122, %p123
      %p125 = scmp.ne.s32.totalorder %s117, %s120
      %p126 = scmp.eq.s32.totalorder %s23, 0
      %p127 = por %p125, %p126
      %p128 = scmp.ne.s32.totalorder %s117, %s120
      %p129 = scmp.eq.s32.totalorder %s28, 3
      %p130 = por %p128, %p129
      %p131 = scmp.ne.s32.totalorder %s120, %s121
      %p132 = scmp.eq.s32.totalorder %s28, 0
      %p133 = por %p131, %p132
      %p134 = scmp.ne.s32.totalorder %s120, %s121
      %p135 = scmp.eq.s32.totalorder %s29, 3
      %p136 = por %p134, %p135
      %p138 = scmp.ne.s32.totalorder %s121, %s137
      %p139 = scmp.eq.s32.totalorder %s29, 0
      %p140 = por %p138, %p139
      %s141 = ssub.s32 %s23, %s30
      %p142 = scmp.eq.s32.totalorder %s141, 0
      %s144 = sadd.s32 %s143, 1
      %s145 = scalar_select %p142, %s143, %s144
      %p148 = pneg %p142
      %p149 = scmp.eq.s32.totalorder %s23, 3
      %p150 = por %p148, %p149
      %p151 = scmp.ne.s32.totalorder %s143, %s146
      %p152 = scmp.eq.s32.totalorder %s23, 0
      %p153 = por %p151, %p152
      %p154 = scmp.ne.s32.totalorder %s143, %s146
      %p155 = scmp.eq.s32.totalorder %s28, 3
      %p156 = por %p154, %p155
      %p157 = scmp.ne.s32.totalorder %s146, %s147
      %p158 = scmp.eq.s32.totalorder %s28, 0
      %p159 = por %p157, %p158
      %p160 = scmp.ne.s32.totalorder %s146, %s147
      %p161 = scmp.eq.s32.totalorder %s29, 3
      %p162 = por %p160, %p161
      %p164 = scmp.ne.s32.totalorder %s147, %s163
      %p165 = scmp.eq.s32.totalorder %s29, 0
      %p166 = por %p164, %p165
      %s167 = ssub.s32 %s23, %s30
      %p168 = scmp.eq.s32.totalorder %s167, 0
      %s170 = sadd.s32 %s169, 1
      %s171 = scalar_select %p168, %s169, %s170
      %p174 = pneg %p168
      %p175 = scmp.eq.s32.totalorder %s23, 3
      %p176 = por %p174, %p175
      %p177 = scmp.ne.s32.totalorder %s169, %s172
      %p178 = scmp.eq.s32.totalorder %s23, 0
      %p179 = por %p177, %p178
      %p180 = scmp.ne.s32.totalorder %s169, %s172
      %p181 = scmp.eq.s32.totalorder %s28, 3
      %p182 = por %p180, %p181
      %p183 = scmp.ne.s32.totalorder %s172, %s173
      %p184 = scmp.eq.s32.totalorder %s28, 0
      %p185 = por %p183, %p184
      %p186 = scmp.ne.s32.totalorder %s172, %s173
      %p187 = scmp.eq.s32.totalorder %s29, 3
      %p188 = por %p186, %p187
      %p190 = scmp.ne.s32.totalorder %s173, %s189
      %p191 = scmp.eq.s32.totalorder %s29, 0
      %p192 = por %p190, %p191
      %s194 = sadd.s32 %s193, 1
      %p197 = scmp.eq.s32.totalorder %s23, 3
      %p198 = scmp.ne.s32.totalorder %s193, %s195
      %p199 = scmp.eq.s32.totalorder %s23, 0
      %p200 = por %p198, %p199
      %p201 = scmp.ne.s32.totalorder %s193, %s195
      %p202 = scmp.eq.s32.totalorder %s28, 3
      %p203 = por %p201, %p202
      %p204 = scmp.ne.s32.totalorder %s195, %s196
      %p205 = scmp.eq.s32.totalorder %s28, 0
      %p206 = por %p204, %p205
      %p207 = scmp.ne.s32.totalorder %s195, %s196
      %p208 = scmp.eq.s32.totalorder %s29, 3
      %p209 = por %p207, %p208
      %p211 = scmp.ne.s32.totalorder %s196, %s210
      %p212 = scmp.eq.s32.totalorder %s29, 0
      %p213 = por %p211, %p212
      %s215 = sadd.s32 %s214, 1
      %p218 = scmp.eq.s32.totalorder %s23, 3
      %p219 = scmp.ne.s32.totalorder %s214, %s216
      %p220 = scmp.eq.s32.totalorder %s23, 0
      %p221 = por %p219, %p220
      %p222 = scmp.ne.s32.totalorder %s214, %s216
      %p223 = scmp.eq.s32.totalorder %s28, 3
      %p224 = por %p222, %p223
      %p225 = scmp.ne.s32.totalorder %s216, %s217
      %p226 = scmp.eq.s32.totalorder %s28, 0
      %p227 = por %p225, %p226
      %p228 = scmp.ne.s32.totalorder %s216, %s217
      %p229 = scmp.eq.s32.totalorder %s29, 3
      %p230 = por %p228, %p229
      %p232 = scmp.ne.s32.totalorder %s217, %s231
      %p233 = scmp.eq.s32.totalorder %s29, 0
      %p234 = por %p232, %p233
      %p235 = scmp.le.s32.totalorder 1, %s23
      %p236 = scmp.lt.s32.totalorder %s23, 5
      %p237 = pnand %p235, %p236
      %p238 = pneg %p237
      // Predicated region
      $region9: #{tpu_custom_call.1} parent=5 // pred_check
        _
      $region10: #{tpu_custom_call.1} parent=5 // pred_check_branch
        %240 = sbr.rel (%p237) target = $region12
      $region11: #{tpu_custom_call.1} parent=5 // pred_region
        %s241 = ssub.s32 %s23, 1
        // Predicated region
        $region13: #{tpu_custom_call.1} parent=11 // pred_check
          %p242 = pneg %p44
        $region14: #{tpu_custom_call.1} parent=11 // pred_check_branch
          %244 = sbr.rel (%p242) target = $region16
        $region15: #{tpu_custom_call.1} parent=11 // pred_region
          _
        $region16: #{tpu_custom_call.1} parent=11 // pred_fallthru
          _
        // Predicated region
        $region17: #{tpu_custom_call.1} parent=11 // pred_check
          %p245 = pneg %p65
        $region18: #{tpu_custom_call.1} parent=11 // pred_check_branch
          %247 = sbr.rel (%p245) target = $region20
        $region19: #{tpu_custom_call.1} parent=11 // pred_region
          %249 = vsyncadd [#allocation4], 0
          %s251 = sshll.u32 %s1, 4
          %s252 = int_to_ptr.hbm [resolvable:$true] %s251
          %s253 = sshll.u32 [#allocation3], 4
          %s254 = int_to_ptr.vmem [resolvable:$true] %s253
          %256 = dma.hbm_to_vmem [thread:$0]  %s252, 64, %s254, [#allocation4]
        $region20: #{tpu_custom_call.1} parent=11 // pred_fallthru
          _
        // Predicated region
        $region21: #{tpu_custom_call.1} parent=11 // pred_check
          %p257 = pneg %p86
        $region22: #{tpu_custom_call.1} parent=11 // pred_check_branch
          %259 = sbr.rel (%p257) target = $region24
        $region23: #{tpu_custom_call.1} parent=11 // pred_region
          %261 = vsyncadd [#allocation7], 0
          %s263 = sshll.u32 %s2, 4
          %s264 = int_to_ptr.hbm [resolvable:$true] %s263
          %s265 = sshll.u32 [#allocation6], 4
          %s266 = int_to_ptr.vmem [resolvable:$true] %s265
          %268 = dma.hbm_to_vmem [thread:$0]  %s264, 16, %s266, [#allocation7]
        $region24: #{tpu_custom_call.1} parent=11 // pred_fallthru
          _
        // Predicated region
        $region25: #{tpu_custom_call.1} parent=11 // pred_check
          %p269 = pneg %p107
        $region26: #{tpu_custom_call.1} parent=11 // pred_check_branch
          %271 = sbr.rel (%p269) target = $region28
        $region27: #{tpu_custom_call.1} parent=11 // pred_region
          %273 = vsyncadd [#allocation7], 0
          %s275 = sshll.u32 %s3, 4
          %s276 = int_to_ptr.hbm [resolvable:$true] %s275
          %s277 = sshll.u32 [#allocation8], 4
          %s278 = int_to_ptr.vmem [resolvable:$true] %s277
          %280 = dma.hbm_to_vmem [thread:$0]  %s276, 16, %s278, [#allocation7]
        $region28: #{tpu_custom_call.1} parent=11 // pred_fallthru
          _
        // Predicated region
        $region29: #{tpu_custom_call.1} parent=11 // pred_check
          %p281 = pneg %p206
        $region30: #{tpu_custom_call.1} parent=11 // pred_check_branch
          %283 = sbr.rel (%p281) target = $region32
        $region31: #{tpu_custom_call.1} parent=11 // pred_region
          %285 = vsyncadd [#allocation13], 0
          %s287 = sshll.u32 %s7, 4
          %s288 = int_to_ptr.hbm [resolvable:$true] %s287
          %s289 = sshll.u32 [#allocation14], 4
          %s290 = int_to_ptr.vmem [resolvable:$true] %s289
          %292 = dma.hbm_to_vmem [thread:$0]  %s288, 16, %s290, [#allocation13]
        $region32: #{tpu_custom_call.1} parent=11 // pred_fallthru
          _
      $region12: #{tpu_custom_call.1} parent=5 // pred_fallthru
        _
      %p293 = scmp.lt.s32.totalorder %s23, 4
      // Predicated region
      $region33: #{tpu_custom_call.1} parent=5 // pred_check
        %p294 = pneg %p293
      $region34: #{tpu_custom_call.1} parent=5 // pred_check_branch
        %296 = sbr.rel (%p294) target = $region36
      $region35: #{tpu_custom_call.1} parent=5 // pred_region
        // Predicated region
        $region37: #{tpu_custom_call.1} parent=35 // pred_check
          %p297 = pneg %p127
        $region38: #{tpu_custom_call.1} parent=35 // pred_check_branch
          %299 = sbr.rel (%p297) target = $region40
        $region39: #{tpu_custom_call.1} parent=35 // pred_region
          %s300 = sand.u32 %s23, 1
          %s301 = scalar_lea.sflag [#allocation10], %s300
          %s302 = sand.u32 %s117, 1
          %s303 = smul.addr %s302, 2048
          %s304 = scalar_lea.vmem [#allocation9], %s303
          %s305 = smul.u32 2, %s23
          %307 = vsyncadd %s301, 0
          %s308 = smul.addr %s305, 4
          %s309 = scalar_lea.hbm %s4, %s308
          %s310 = sshll.u32 %s309, 4
          %s311 = int_to_ptr.hbm [resolvable:$true] %s310
          %s312 = sshll.u32 %s304, 4
          %s313 = int_to_ptr.vmem [resolvable:$true] %s312
          %318 = dma.hbm_to_vmem [thread:$0]  %s311, 32768, %s313, %s301, 512, 128, 8
        $region40: #{tpu_custom_call.1} parent=35 // pred_fallthru
          _
        // Predicated region
        $region41: #{tpu_custom_call.1} parent=35 // pred_check
          %p319 = pneg %p153
        $region42: #{tpu_custom_call.1} parent=35 // pred_check_branch
          %321 = sbr.rel (%p319) target = $region44
        $region43: #{tpu_custom_call.1} parent=35 // pred_region
          %s322 = sand.u32 %s23, 1
          %s323 = scalar_lea.sflag [#allocation10], %s322
          %s324 = sand.u32 %s143, 1
          %s325 = smul.addr %s324, 2
          %s326 = scalar_lea.vmem [#allocation11], %s325
          %s327 = smul.u32 2, %s23
          %329 = vsyncadd %s323, 0
          %s330 = scalar_lea.hbm %s5, %s327
          %s332 = sshll.u32 %s330, 4
          %s333 = int_to_ptr.hbm [resolvable:$true] %s332
          %s334 = sshll.u32 %s326, 4
          %s335 = int_to_ptr.vmem [resolvable:$true] %s334
          %337 = dma.hbm_to_vmem [thread:$0]  %s333, 32, %s335, %s323
        $region44: #{tpu_custom_call.1} parent=35 // pred_fallthru
          _
        // Predicated region
        $region45: #{tpu_custom_call.1} parent=35 // pred_check
          %p338 = pneg %p179
        $region46: #{tpu_custom_call.1} parent=35 // pred_check_branch
          %340 = sbr.rel (%p338) target = $region48
        $region47: #{tpu_custom_call.1} parent=35 // pred_region
          %s341 = sand.u32 %s23, 1
          %s342 = scalar_lea.sflag [#allocation13], %s341
          %s343 = sand.u32 %s169, 1
          %s344 = smul.addr %s343, 128
          %s345 = scalar_lea.vmem [#allocation12], %s344
          %s346 = smul.u32 32, %s23
          %348 = vsyncadd %s342, 0
          %s349 = smul.addr %s346, 4
          %s350 = scalar_lea.hbm %s6, %s349
          %s351 = sshll.u32 %s350, 4
          %s352 = int_to_ptr.hbm [resolvable:$true] %s351
          %s353 = sshll.u32 %s345, 4
          %s354 = int_to_ptr.vmem [resolvable:$true] %s353
          %359 = dma.hbm_to_vmem [thread:$0]  %s352, 2048, %s354, %s342, 64, 64, 4
        $region48: #{tpu_custom_call.1} parent=35 // pred_fallthru
          _
      $region36: #{tpu_custom_call.1} parent=5 // pred_fallthru
        _
      %p360 = scmp.le.s32.totalorder 1, %s23
      %p361 = scmp.lt.s32.totalorder %s23, 5
      %p362 = pnand %p360, %p361
      %p363 = pneg %p362
      // Predicated region
      $region49: #{tpu_custom_call.1} parent=5 // pred_check
        _
      $region50: #{tpu_custom_call.1} parent=5 // pred_check_branch
        %365 = sbr.rel (%p362) target = $region52
      $region51: #{tpu_custom_call.1} parent=5 // pred_region
        %s366 = ssub.s32 %s23, 1
        // Predicated region
        $region53: #{tpu_custom_call.1} parent=51 // pred_check
          %p367 = pneg %p65
        $region54: #{tpu_custom_call.1} parent=51 // pred_check_branch
          %369 = sbr.rel (%p367) target = $region56
        $region55: #{tpu_custom_call.1} parent=51 // pred_region
          %371 = dma.done [#allocation4], 64
        $region56: #{tpu_custom_call.1} parent=51 // pred_fallthru
          _
        // Predicated region
        $region57: #{tpu_custom_call.1} parent=51 // pred_check
          %p372 = pneg %p86
        $region58: #{tpu_custom_call.1} parent=51 // pred_check_branch
          %374 = sbr.rel (%p372) target = $region60
        $region59: #{tpu_custom_call.1} parent=51 // pred_region
          %376 = dma.done [#allocation7], 16
        $region60: #{tpu_custom_call.1} parent=51 // pred_fallthru
          _
        // Predicated region
        $region61: #{tpu_custom_call.1} parent=51 // pred_check
          %p377 = pneg %p107
        $region62: #{tpu_custom_call.1} parent=51 // pred_check_branch
          %379 = sbr.rel (%p377) target = $region64
        $region63: #{tpu_custom_call.1} parent=51 // pred_region
          %381 = dma.done [#allocation7], 16
        $region64: #{tpu_custom_call.1} parent=51 // pred_fallthru
          _
        %s382 = sand.u32 %s28, 1
        %s383 = scalar_lea.sflag [#allocation10], %s382
        %s384 = sand.u32 %s120, 1
        %s385 = smul.addr %s384, 2048
        %s386 = scalar_lea.vmem [#allocation9], %s385
        // Predicated region
        $region65: #{tpu_custom_call.1} parent=51 // pred_check
          %p387 = pneg %p133
        $region66: #{tpu_custom_call.1} parent=51 // pred_check_branch
          %389 = sbr.rel (%p387) target = $region68
        $region67: #{tpu_custom_call.1} parent=51 // pred_region
          %391 = dma.done %s383, 32768
        $region68: #{tpu_custom_call.1} parent=51 // pred_fallthru
          _
        %s392 = sand.u32 %s28, 1
        %s393 = scalar_lea.sflag [#allocation10], %s392
        %s394 = sand.u32 %s146, 1
        %s395 = smul.addr %s394, 2
        %s396 = scalar_lea.vmem [#allocation11], %s395
        // Predicated region
        $region69: #{tpu_custom_call.1} parent=51 // pred_check
          %p397 = pneg %p159
        $region70: #{tpu_custom_call.1} parent=51 // pred_check_branch
          %399 = sbr.rel (%p397) target = $region72
        $region71: #{tpu_custom_call.1} parent=51 // pred_region
          %401 = dma.done %s393, 32
        $region72: #{tpu_custom_call.1} parent=51 // pred_fallthru
          _
        %s402 = sand.u32 %s28, 1
        %s403 = scalar_lea.sflag [#allocation13], %s402
        %s404 = sand.u32 %s172, 1
        %s405 = smul.addr %s404, 128
        %s406 = scalar_lea.vmem [#allocation12], %s405
        // Predicated region
        $region73: #{tpu_custom_call.1} parent=51 // pred_check
          %p407 = pneg %p185
        $region74: #{tpu_custom_call.1} parent=51 // pred_check_branch
          %409 = sbr.rel (%p407) target = $region76
        $region75: #{tpu_custom_call.1} parent=51 // pred_region
          %411 = dma.done %s403, 2048
        $region76: #{tpu_custom_call.1} parent=51 // pred_fallthru
          _
        // Predicated region
        $region77: #{tpu_custom_call.1} parent=51 // pred_check
          %p412 = pneg %p206
        $region78: #{tpu_custom_call.1} parent=51 // pred_check_branch
          %414 = sbr.rel (%p412) target = $region80
        $region79: #{tpu_custom_call.1} parent=51 // pred_region
          %416 = dma.done [#allocation13], 16
        $region80: #{tpu_custom_call.1} parent=51 // pred_fallthru
          _
        %p417 = pneg %p44
        %p418 = pneg %p41
        %p419 = pneg %p65
        %p420 = pneg %p62
        %p421 = pneg %p86
        %p422 = pneg %p83
        %p423 = pneg %p107
        %p424 = pneg %p104
        %s425 = sand.u32 %s28, 1
        %s426 = scalar_lea.sflag [#allocation10], %s425
        %s427 = sand.u32 %s120, 1
        %s428 = smul.addr %s427, 2048
        %s429 = scalar_lea.vmem [#allocation9], %s428
        %p430 = pneg %p133
        %p431 = pneg %p130
        %s432 = sand.u32 %s28, 1
        %s433 = scalar_lea.sflag [#allocation10], %s432
        %s434 = sand.u32 %s146, 1
        %s435 = smul.addr %s434, 2
        %s436 = scalar_lea.vmem [#allocation11], %s435
        %p437 = pneg %p159
        %p438 = pneg %p156
        %s439 = sand.u32 %s28, 1
        %s440 = scalar_lea.sflag [#allocation13], %s439
        %s441 = sand.u32 %s172, 1
        %s442 = smul.addr %s441, 128
        %s443 = scalar_lea.vmem [#allocation12], %s442
        %p444 = pneg %p185
        %p445 = pneg %p182
        %p446 = pneg %p206
        %p447 = pneg %p203
        %p448 = pneg %p227
        %p449 = pneg %p224
        %s450 = smul.u32 2, %s28
        %s451 = smul.u32 2, %s28
        %s452 = smul.u32 32, %s28
        %p453 = scmp.eq.s32.totalorder %s28, 0
        // Predicated region
        $region81: #{tpu_custom_call.1} parent=51 // pred_check
          %p454 = pneg %p453
        $region82: #{tpu_custom_call.1} parent=51 // pred_check_branch
          %456 = sbr.rel (%p454) target = $region84
        $region83: #{tpu_custom_call.1} parent=51 // pred_region
          %v457 = vld [vmem:[%s0] sm:$0xff]
          %v458 = vld [vmem:[%s0 + $0x8] sm:$0xff]
          %v459 = vld [vmem:[%s0 + $0x10] sm:$0xff]
          %v460 = vld [vmem:[%s0 + $0x18] sm:$0xff]
          %v461 = vld [vmem:[#allocation3] sm:$0xf]
          %vm462 = vcmask 31744
          %v464 = vsel %vm462, %v457, 0
          %v467 = vsel %vm462, %v458, 0
          %v470 = vsel %vm462, %v459, 0
          %v473 = vsel %vm462, %v460, 0
          %vm475 = vcmask 1043456
          %v477 = vsel %vm475, %v461, 0
          %479 = vmatpush.msra.mxu0 0.0
          %480 = vmatpush.msra.mxu0 0.0
          %481 = vmatpush.msra.mxu0 0.0
          %482 = vmatpush.msra.mxu0 0.0
          %483 = vmatpush.msra.mxu0 0.0
          %484 = vmatpush.msra.mxu0 0.0
          %485 = vmatpush.msra.mxu0 0.0
          %486 = vmatpush.msra.mxu0 0.0
          %487 = vmatpush.msra.mxu0 0.0
          %488 = vmatpush.msra.mxu0 0.0
          %489 = vmatpush.msra.mxu0 0.0
          %490 = vmatpush.msra.mxu0 0.0
          %491 = vmatpush.msra.mxu0 0.0
          %492 = vmatpush.msra.mxu0 0.0
          %493 = vmatpush.msra.mxu0 0.0
          %494 = vmatpush.msra.mxu0 %v477
          %495 = vmatmul.f32.gmra.mxu0 %v464
          %v496 = vpop.f32.mrf.mxu0
          %v497 = vadd.f32 0.0, %v496
          %498 = vmatmul.f32.gmra.mxu0 %v467
          %v499 = vpop.f32.mrf.mxu0
          %v500 = vadd.f32 0.0, %v499
          %501 = vmatmul.f32.gmra.mxu0 %v470
          %v502 = vpop.f32.mrf.mxu0
          %v503 = vadd.f32 0.0, %v502
          %504 = vmatmul.f32.gmra.mxu0 %v473
          %v505 = vpop.f32.mrf.mxu0
          %v506 = vadd.f32 0.0, %v505
          %507 = vdwg.mxu0
          %v508 = vld [vmem:[#allocation6] sm:$0x1]
          %v510 = vperm.slane %v508, 0
          %v512 = vmul.f32 %v497, %v510
          %v513 = vmul.f32 %v500, %v510
          %v514 = vmul.f32 %v503, %v510
          %v515 = vmul.f32 %v506, %v510
          %v516 = vld [vmem:[#allocation8] sm:$0x1]
          %v518 = vperm.slane %v516, 0
          %v520 = vadd.f32 %v512, %v518
          %v521 = vadd.f32 %v513, %v518
          %v522 = vadd.f32 %v514, %v518
          %v523 = vadd.f32 %v515, %v518
          %v524 = vmax.f32 %v520, 0.0
          %v525 = vmax.f32 %v521, 0.0
          %v526 = vmax.f32 %v522, 0.0
          %v527 = vmax.f32 %v523, 0.0
          %528 = vst [vmem:[#allocation2] sm:$0xff] %v524
          %529 = vst [vmem:[#allocation2 + $0x8] sm:$0xff] %v525
          %530 = vst [vmem:[#allocation2 + $0x10] sm:$0xff] %v526
          %531 = vst [vmem:[#allocation2 + $0x18] sm:$0xff] %v527
          %v532 = vld [vmem:[#allocation14] sm:$0x1]
          %v534 = vperm.slane %v532, 0
          %536 = vst [vmem:[#allocation15] sm:$0x3] %v534
        $region84: #{tpu_custom_call.1} parent=51 // pred_fallthru
          _
        %v537 = vld [vmem:[#allocation2] sm:$0xff]
        %v538 = vld [vmem:[#allocation2 + $0x8] sm:$0xff]
        %v539 = vld [vmem:[#allocation2 + $0x10] sm:$0xff]
        %v540 = vld [vmem:[#allocation2 + $0x18] sm:$0xff]
        %v541 = vld [vmem:[%s386] sm:$0xff]
        %v542 = vld [vmem:[%s386 + $0x8] sm:$0xff]
        %v543 = vld [vmem:[%s386 + $0x10] sm:$0xff]
        %v544 = vld [vmem:[%s386 + $0x18] sm:$0xff]
        %v545 = vld [vmem:[%s386 + $0x20] sm:$0xff]
        %v546 = vld [vmem:[%s386 + $0x28] sm:$0xff]
        %v547 = vld [vmem:[%s386 + $0x30] sm:$0xff]
        %v548 = vld [vmem:[%s386 + $0x38] sm:$0xff]
        %v549 = vld [vmem:[%s386 + $0x40] sm:$0xff]
        %v550 = vld [vmem:[%s386 + $0x48] sm:$0xff]
        %v551 = vld [vmem:[%s386 + $0x50] sm:$0xff]
        %v552 = vld [vmem:[%s386 + $0x58] sm:$0xff]
        %v553 = vld [vmem:[%s386 + $0x60] sm:$0xff]
        %v554 = vld [vmem:[%s386 + $0x68] sm:$0xff]
        %v555 = vld [vmem:[%s386 + $0x70] sm:$0xff]
        %v556 = vld [vmem:[%s386 + $0x78] sm:$0xff]
        %v557 = vunpack.c.l.bf16 %v541
        %v558 = vunpack.c.h.bf16 %v541
        %v559 = vunpack.c.l.bf16 %v542
        %v560 = vunpack.c.h.bf16 %v542
        %v561 = vunpack.c.l.bf16 %v543
        %v562 = vunpack.c.h.bf16 %v543
        %v563 = vunpack.c.l.bf16 %v544
        %v564 = vunpack.c.h.bf16 %v544
        %v565 = vunpack.c.l.bf16 %v545
        %v566 = vunpack.c.h.bf16 %v545
        %v567 = vunpack.c.l.bf16 %v546
        %v568 = vunpack.c.h.bf16 %v546
        %v569 = vunpack.c.l.bf16 %v547
        %v570 = vunpack.c.h.bf16 %v547
        %v571 = vunpack.c.l.bf16 %v548
        %v572 = vunpack.c.h.bf16 %v548
        %v573 = vunpack.c.l.bf16 %v549
        %v574 = vunpack.c.h.bf16 %v549
        %v575 = vunpack.c.l.bf16 %v550
        %v576 = vunpack.c.h.bf16 %v550
        %v577 = vunpack.c.l.bf16 %v551
        %v578 = vunpack.c.h.bf16 %v551
        %v579 = vunpack.c.l.bf16 %v552
        %v580 = vunpack.c.h.bf16 %v552
        %v581 = vunpack.c.l.bf16 %v553
        %v582 = vunpack.c.h.bf16 %v553
        %v583 = vunpack.c.l.bf16 %v554
        %v584 = vunpack.c.h.bf16 %v554
        %v585 = vunpack.c.l.bf16 %v555
        %v586 = vunpack.c.h.bf16 %v555
        %v587 = vunpack.c.l.bf16 %v556
        %v588 = vunpack.c.h.bf16 %v556
        %s589 = scalar_lea.vmem %s386, 128 [#allocation9]
        %v590 = vld [vmem:[%s589] sm:$0xff]
        %v591 = vld [vmem:[%s589 + $0x8] sm:$0xff]
        %v592 = vld [vmem:[%s589 + $0x10] sm:$0xff]
        %v593 = vld [vmem:[%s589 + $0x18] sm:$0xff]
        %v594 = vld [vmem:[%s589 + $0x20] sm:$0xff]
        %v595 = vld [vmem:[%s589 + $0x28] sm:$0xff]
        %v596 = vld [vmem:[%s589 + $0x30] sm:$0xff]
        %v597 = vld [vmem:[%s589 + $0x38] sm:$0xff]
        %v598 = vld [vmem:[%s589 + $0x40] sm:$0xff]
        %v599 = vld [vmem:[%s589 + $0x48] sm:$0xff]
        %v600 = vld [vmem:[%s589 + $0x50] sm:$0xff]
        %v601 = vld [vmem:[%s589 + $0x58] sm:$0xff]
        %v602 = vld [vmem:[%s589 + $0x60] sm:$0xff]
        %v603 = vld [vmem:[%s589 + $0x68] sm:$0xff]
        %v604 = vld [vmem:[%s589 + $0x70] sm:$0xff]
        %v605 = vld [vmem:[%s589 + $0x78] sm:$0xff]
        %v606 = vunpack.c.l.bf16 %v590
        %v607 = vunpack.c.h.bf16 %v590
        %v608 = vunpack.c.l.bf16 %v591
        %v609 = vunpack.c.h.bf16 %v591
        %v610 = vunpack.c.l.bf16 %v592
        %v611 = vunpack.c.h.bf16 %v592
        %v612 = vunpack.c.l.bf16 %v593
        %v613 = vunpack.c.h.bf16 %v593
        %v614 = vunpack.c.l.bf16 %v594
        %v615 = vunpack.c.h.bf16 %v594
        %v616 = vunpack.c.l.bf16 %v595
        %v617 = vunpack.c.h.bf16 %v595
        %v618 = vunpack.c.l.bf16 %v596
        %v619 = vunpack.c.h.bf16 %v596
        %v620 = vunpack.c.l.bf16 %v597
        %v621 = vunpack.c.h.bf16 %v597
        %v622 = vunpack.c.l.bf16 %v598
        %v623 = vunpack.c.h.bf16 %v598
        %v624 = vunpack.c.l.bf16 %v599
        %v625 = vunpack.c.h.bf16 %v599
        %v626 = vunpack.c.l.bf16 %v600
        %v627 = vunpack.c.h.bf16 %v600
        %v628 = vunpack.c.l.bf16 %v601
        %v629 = vunpack.c.h.bf16 %v601
        %v630 = vunpack.c.l.bf16 %v602
        %v631 = vunpack.c.h.bf16 %v602
        %v632 = vunpack.c.l.bf16 %v603
        %v633 = vunpack.c.h.bf16 %v603
        %v634 = vunpack.c.l.bf16 %v604
        %v635 = vunpack.c.h.bf16 %v604
        %v636 = vunpack.c.l.bf16 %v605
        %v637 = vunpack.c.h.bf16 %v605
        %v639 = vrot.slane %v537, 2
        %641 = vmatpush.msra.mxu0 %v636
        %642 = vmatpush.msra.mxu0 %v634
        %643 = vmatpush.msra.mxu0 %v632
        %644 = vmatpush.msra.mxu0 %v630
        %645 = vmatpush.msra.mxu0 %v628
        %646 = vmatpush.msra.mxu0 %v626
        %647 = vmatpush.msra.mxu0 %v624
        %648 = vmatpush.msra.mxu0 %v622
        %649 = vmatpush.msra.mxu0 %v620
        %650 = vmatpush.msra.mxu0 %v618
        %651 = vmatpush.msra.mxu0 %v616
        %652 = vmatpush.msra.mxu0 %v614
        %653 = vmatpush.msra.mxu0 %v612
        %654 = vmatpush.msra.mxu0 %v610
        %655 = vmatpush.msra.mxu0 %v608
        %656 = vmatpush.msra.mxu0 %v606
        %657 = vmatmul.f32.gmra.mxu0 %v639
        %v658 = vpop.f32.mrf.mxu0
        %v659 = vadd.f32 0.0, %v658
        %660 = vdwg.mxu0
        %661 = vmatpush.msra.mxu0 %v637
        %662 = vmatpush.msra.mxu0 %v635
        %663 = vmatpush.msra.mxu0 %v633
        %664 = vmatpush.msra.mxu0 %v631
        %665 = vmatpush.msra.mxu0 %v629
        %666 = vmatpush.msra.mxu0 %v627
        %667 = vmatpush.msra.mxu0 %v625
        %668 = vmatpush.msra.mxu0 %v623
        %669 = vmatpush.msra.mxu0 %v621
        %670 = vmatpush.msra.mxu0 %v619
        %671 = vmatpush.msra.mxu0 %v617
        %672 = vmatpush.msra.mxu0 %v615
        %673 = vmatpush.msra.mxu0 %v613
        %674 = vmatpush.msra.mxu0 %v611
        %675 = vmatpush.msra.mxu0 %v609
        %676 = vmatpush.msra.mxu0 %v607
        %677 = vmatmul.f32.gmra.mxu0 %v639
        %v678 = vpop.f32.mrf.mxu0
        %v679 = vadd.f32 0.0, %v678
        %680 = vdwg.mxu0
        %681 = vmatpush.msra.mxu0 %v587
        %682 = vmatpush.msra.mxu0 %v585
        %683 = vmatpush.msra.mxu0 %v583
        %684 = vmatpush.msra.mxu0 %v581
        %685 = vmatpush.msra.mxu0 %v579
        %686 = vmatpush.msra.mxu0 %v577
        %687 = vmatpush.msra.mxu0 %v575
        %688 = vmatpush.msra.mxu0 %v573
        %689 = vmatpush.msra.mxu0 %v571
        %690 = vmatpush.msra.mxu0 %v569
        %691 = vmatpush.msra.mxu0 %v567
        %692 = vmatpush.msra.mxu0 %v565
        %693 = vmatpush.msra.mxu0 %v563
        %694 = vmatpush.msra.mxu0 %v561
        %695 = vmatpush.msra.mxu0 %v559
        %696 = vmatpush.msra.mxu0 %v557
        %697 = vmatmul.f32.gmra.mxu0 %v537
        %v698 = vpop.f32.mrf.mxu0
        %v699 = vadd.f32 %v659, %v698
        %700 = vdwg.mxu0
        %701 = vmatpush.msra.mxu0 %v588
        %702 = vmatpush.msra.mxu0 %v586
        %703 = vmatpush.msra.mxu0 %v584
        %704 = vmatpush.msra.mxu0 %v582
        %705 = vmatpush.msra.mxu0 %v580
        %706 = vmatpush.msra.mxu0 %v578
        %707 = vmatpush.msra.mxu0 %v576
        %708 = vmatpush.msra.mxu0 %v574
        %709 = vmatpush.msra.mxu0 %v572
        %710 = vmatpush.msra.mxu0 %v570
        %711 = vmatpush.msra.mxu0 %v568
        %712 = vmatpush.msra.mxu0 %v566
        %713 = vmatpush.msra.mxu0 %v564
        %714 = vmatpush.msra.mxu0 %v562
        %715 = vmatpush.msra.mxu0 %v560
        %716 = vmatpush.msra.mxu0 %v558
        %717 = vmatmul.f32.gmra.mxu0 %v537
        %v718 = vpop.f32.mrf.mxu0
        %v719 = vadd.f32 %v679, %v718
        %720 = vdwg.mxu0
        %s721 = scalar_lea.vmem %s386, 256 [#allocation9]
        %v722 = vld [vmem:[%s721] sm:$0xff]
        %v723 = vld [vmem:[%s721 + $0x8] sm:$0xff]
        %v724 = vld [vmem:[%s721 + $0x10] sm:$0xff]
        %v725 = vld [vmem:[%s721 + $0x18] sm:$0xff]
        %v726 = vld [vmem:[%s721 + $0x20] sm:$0xff]
        %v727 = vld [vmem:[%s721 + $0x28] sm:$0xff]
        %v728 = vld [vmem:[%s721 + $0x30] sm:$0xff]
        %v729 = vld [vmem:[%s721 + $0x38] sm:$0xff]
        %v730 = vld [vmem:[%s721 + $0x40] sm:$0xff]
        %v731 = vld [vmem:[%s721 + $0x48] sm:$0xff]
        %v732 = vld [vmem:[%s721 + $0x50] sm:$0xff]
        %v733 = vld [vmem:[%s721 + $0x58] sm:$0xff]
        %v734 = vld [vmem:[%s721 + $0x60] sm:$0xff]
        %v735 = vld [vmem:[%s721 + $0x68] sm:$0xff]
        %v736 = vld [vmem:[%s721 + $0x70] sm:$0xff]
        %v737 = vld [vmem:[%s721 + $0x78] sm:$0xff]
        %v738 = vunpack.c.l.bf16 %v722
        %v739 = vunpack.c.h.bf16 %v722
        %v740 = vunpack.c.l.bf16 %v723
        %v741 = vunpack.c.h.bf16 %v723
        %v742 = vunpack.c.l.bf16 %v724
        %v743 = vunpack.c.h.bf16 %v724
        %v744 = vunpack.c.l.bf16 %v725
        %v745 = vunpack.c.h.bf16 %v725
        %v746 = vunpack.c.l.bf16 %v726
        %v747 = vunpack.c.h.bf16 %v726
        %v748 = vunpack.c.l.bf16 %v727
        %v749 = vunpack.c.h.bf16 %v727
        %v750 = vunpack.c.l.bf16 %v728
        %v751 = vunpack.c.h.bf16 %v728
        %v752 = vunpack.c.l.bf16 %v729
        %v753 = vunpack.c.h.bf16 %v729
        %v754 = vunpack.c.l.bf16 %v730
        %v755 = vunpack.c.h.bf16 %v730
        %v756 = vunpack.c.l.bf16 %v731
        %v757 = vunpack.c.h.bf16 %v731
        %v758 = vunpack.c.l.bf16 %v732
        %v759 = vunpack.c.h.bf16 %v732
        %v760 = vunpack.c.l.bf16 %v733
        %v761 = vunpack.c.h.bf16 %v733
        %v762 = vunpack.c.l.bf16 %v734
        %v763 = vunpack.c.h.bf16 %v734
        %v764 = vunpack.c.l.bf16 %v735
        %v765 = vunpack.c.h.bf16 %v735
        %v766 = vunpack.c.l.bf16 %v736
        %v767 = vunpack.c.h.bf16 %v736
        %v768 = vunpack.c.l.bf16 %v737
        %v769 = vunpack.c.h.bf16 %v737
        %v770 = vrot.slane %v537, 4
        %772 = vmatpush.msra.mxu0 %v768
        %773 = vmatpush.msra.mxu0 %v766
        %774 = vmatpush.msra.mxu0 %v764
        %775 = vmatpush.msra.mxu0 %v762
        %776 = vmatpush.msra.mxu0 %v760
        %777 = vmatpush.msra.mxu0 %v758
        %778 = vmatpush.msra.mxu0 %v756
        %779 = vmatpush.msra.mxu0 %v754
        %780 = vmatpush.msra.mxu0 %v752
        %781 = vmatpush.msra.mxu0 %v750
        %782 = vmatpush.msra.mxu0 %v748
        %783 = vmatpush.msra.mxu0 %v746
        %784 = vmatpush.msra.mxu0 %v744
        %785 = vmatpush.msra.mxu0 %v742
        %786 = vmatpush.msra.mxu0 %v740
        %787 = vmatpush.msra.mxu0 %v738
        %788 = vmatmul.f32.gmra.mxu0 %v770
        %v789 = vpop.f32.mrf.mxu0
        %v790 = vadd.f32 0.0, %v789
        %791 = vdwg.mxu0
        %792 = vmatpush.msra.mxu0 %v769
        %793 = vmatpush.msra.mxu0 %v767
        %794 = vmatpush.msra.mxu0 %v765
        %795 = vmatpush.msra.mxu0 %v763
        %796 = vmatpush.msra.mxu0 %v761
        %797 = vmatpush.msra.mxu0 %v759
        %798 = vmatpush.msra.mxu0 %v757
        %799 = vmatpush.msra.mxu0 %v755
        %800 = vmatpush.msra.mxu0 %v753
        %801 = vmatpush.msra.mxu0 %v751
        %802 = vmatpush.msra.mxu0 %v749
        %803 = vmatpush.msra.mxu0 %v747
        %804 = vmatpush.msra.mxu0 %v745
        %805 = vmatpush.msra.mxu0 %v743
        %806 = vmatpush.msra.mxu0 %v741
        %807 = vmatpush.msra.mxu0 %v739
        %808 = vmatmul.f32.gmra.mxu0 %v770
        %v809 = vpop.f32.mrf.mxu0
        %v810 = vadd.f32 0.0, %v809
        %811 = vdwg.mxu0
        %v812 = vadd.f32 %v699, %v790
        %v813 = vadd.f32 %v719, %v810
        %s814 = scalar_lea.vmem %s386, 384 [#allocation9]
        %v815 = vld [vmem:[%s814] sm:$0xff]
        %v816 = vld [vmem:[%s814 + $0x8] sm:$0xff]
        %v817 = vld [vmem:[%s814 + $0x10] sm:$0xff]
        %v818 = vld [vmem:[%s814 + $0x18] sm:$0xff]
        %v819 = vld [vmem:[%s814 + $0x20] sm:$0xff]
        %v820 = vld [vmem:[%s814 + $0x28] sm:$0xff]
        %v821 = vld [vmem:[%s814 + $0x30] sm:$0xff]
        %v822 = vld [vmem:[%s814 + $0x38] sm:$0xff]
        %v823 = vld [vmem:[%s814 + $0x40] sm:$0xff]
        %v824 = vld [vmem:[%s814 + $0x48] sm:$0xff]
        %v825 = vld [vmem:[%s814 + $0x50] sm:$0xff]
        %v826 = vld [vmem:[%s814 + $0x58] sm:$0xff]
        %v827 = vld [vmem:[%s814 + $0x60] sm:$0xff]
        %v828 = vld [vmem:[%s814 + $0x68] sm:$0xff]
        %v829 = vld [vmem:[%s814 + $0x70] sm:$0xff]
        %v830 = vld [vmem:[%s814 + $0x78] sm:$0xff]
        %v831 = vunpack.c.l.bf16 %v815
        %v832 = vunpack.c.h.bf16 %v815
        %v833 = vunpack.c.l.bf16 %v816
        %v834 = vunpack.c.h.bf16 %v816
        %v835 = vunpack.c.l.bf16 %v817
        %v836 = vunpack.c.h.bf16 %v817
        %v837 = vunpack.c.l.bf16 %v818
        %v838 = vunpack.c.h.bf16 %v818
        %v839 = vunpack.c.l.bf16 %v819
        %v840 = vunpack.c.h.bf16 %v819
        %v841 = vunpack.c.l.bf16 %v820
        %v842 = vunpack.c.h.bf16 %v820
        %v843 = vunpack.c.l.bf16 %v821
        %v844 = vunpack.c.h.bf16 %v821
        %v845 = vunpack.c.l.bf16 %v822
        %v846 = vunpack.c.h.bf16 %v822
        %v847 = vunpack.c.l.bf16 %v823
        %v848 = vunpack.c.h.bf16 %v823
        %v849 = vunpack.c.l.bf16 %v824
        %v850 = vunpack.c.h.bf16 %v824
        %v851 = vunpack.c.l.bf16 %v825
        %v852 = vunpack.c.h.bf16 %v825
        %v853 = vunpack.c.l.bf16 %v826
        %v854 = vunpack.c.h.bf16 %v826
        %v855 = vunpack.c.l.bf16 %v827
        %v856 = vunpack.c.h.bf16 %v827
        %v857 = vunpack.c.l.bf16 %v828
        %v858 = vunpack.c.h.bf16 %v828
        %v859 = vunpack.c.l.bf16 %v829
        %v860 = vunpack.c.h.bf16 %v829
        %v861 = vunpack.c.l.bf16 %v830
        %v862 = vunpack.c.h.bf16 %v830
        %v863 = vrot.slane %v537, 6
        %865 = vmatpush.msra.mxu0 %v861
        %866 = vmatpush.msra.mxu0 %v859
        %867 = vmatpush.msra.mxu0 %v857
        %868 = vmatpush.msra.mxu0 %v855
        %869 = vmatpush.msra.mxu0 %v853
        %870 = vmatpush.msra.mxu0 %v851
        %871 = vmatpush.msra.mxu0 %v849
        %872 = vmatpush.msra.mxu0 %v847
        %873 = vmatpush.msra.mxu0 %v845
        %874 = vmatpush.msra.mxu0 %v843
        %875 = vmatpush.msra.mxu0 %v841
        %876 = vmatpush.msra.mxu0 %v839
        %877 = vmatpush.msra.mxu0 %v837
        %878 = vmatpush.msra.mxu0 %v835
        %879 = vmatpush.msra.mxu0 %v833
        %880 = vmatpush.msra.mxu0 %v831
        %881 = vmatmul.f32.gmra.mxu0 %v863
        %v882 = vpop.f32.mrf.mxu0
        %v883 = vadd.f32 0.0, %v882
        %884 = vdwg.mxu0
        %885 = vmatpush.msra.mxu0 %v862
        %886 = vmatpush.msra.mxu0 %v860
        %887 = vmatpush.msra.mxu0 %v858
        %888 = vmatpush.msra.mxu0 %v856
        %889 = vmatpush.msra.mxu0 %v854
        %890 = vmatpush.msra.mxu0 %v852
        %891 = vmatpush.msra.mxu0 %v850
        %892 = vmatpush.msra.mxu0 %v848
        %893 = vmatpush.msra.mxu0 %v846
        %894 = vmatpush.msra.mxu0 %v844
        %895 = vmatpush.msra.mxu0 %v842
        %896 = vmatpush.msra.mxu0 %v840
        %897 = vmatpush.msra.mxu0 %v838
        %898 = vmatpush.msra.mxu0 %v836
        %899 = vmatpush.msra.mxu0 %v834
        %900 = vmatpush.msra.mxu0 %v832
        %901 = vmatmul.f32.gmra.mxu0 %v863
        %v902 = vpop.f32.mrf.mxu0
        %v903 = vadd.f32 0.0, %v902
        %904 = vdwg.mxu0
        %v905 = vadd.f32 %v812, %v883
        %v906 = vadd.f32 %v813, %v903
        %s907 = scalar_lea.vmem %s386, 512 [#allocation9]
        %v908 = vld [vmem:[%s907] sm:$0xff]
        %v909 = vld [vmem:[%s907 + $0x8] sm:$0xff]
        %v910 = vld [vmem:[%s907 + $0x10] sm:$0xff]
        %v911 = vld [vmem:[%s907 + $0x18] sm:$0xff]
        %v912 = vld [vmem:[%s907 + $0x20] sm:$0xff]
        %v913 = vld [vmem:[%s907 + $0x28] sm:$0xff]
        %v914 = vld [vmem:[%s907 + $0x30] sm:$0xff]
        %v915 = vld [vmem:[%s907 + $0x38] sm:$0xff]
        %v916 = vld [vmem:[%s907 + $0x40] sm:$0xff]
        %v917 = vld [vmem:[%s907 + $0x48] sm:$0xff]
        %v918 = vld [vmem:[%s907 + $0x50] sm:$0xff]
        %v919 = vld [vmem:[%s907 + $0x58] sm:$0xff]
        %v920 = vld [vmem:[%s907 + $0x60] sm:$0xff]
        %v921 = vld [vmem:[%s907 + $0x68] sm:$0xff]
        %v922 = vld [vmem:[%s907 + $0x70] sm:$0xff]
        %v923 = vld [vmem:[%s907 + $0x78] sm:$0xff]
        %v924 = vunpack.c.l.bf16 %v908
        %v925 = vunpack.c.h.bf16 %v908
        %v926 = vunpack.c.l.bf16 %v909
        %v927 = vunpack.c.h.bf16 %v909
        %v928 = vunpack.c.l.bf16 %v910
        %v929 = vunpack.c.h.bf16 %v910
        %v930 = vunpack.c.l.bf16 %v911
        %v931 = vunpack.c.h.bf16 %v911
        %v932 = vunpack.c.l.bf16 %v912
        %v933 = vunpack.c.h.bf16 %v912
        %v934 = vunpack.c.l.bf16 %v913
        %v935 = vunpack.c.h.bf16 %v913
        %v936 = vunpack.c.l.bf16 %v914
        %v937 = vunpack.c.h.bf16 %v914
        %v938 = vunpack.c.l.bf16 %v915
        %v939 = vunpack.c.h.bf16 %v915
        %v940 = vunpack.c.l.bf16 %v916
        %v941 = vunpack.c.h.bf16 %v916
        %v942 = vunpack.c.l.bf16 %v917
        %v943 = vunpack.c.h.bf16 %v917
        %v944 = vunpack.c.l.bf16 %v918
        %v945 = vunpack.c.h.bf16 %v918
        %v946 = vunpack.c.l.bf16 %v919
        %v947 = vunpack.c.h.bf16 %v919
        %v948 = vunpack.c.l.bf16 %v920
        %v949 = vunpack.c.h.bf16 %v920
        %v950 = vunpack.c.l.bf16 %v921
        %v951 = vunpack.c.h.bf16 %v921
        %v952 = vunpack.c.l.bf16 %v922
        %v953 = vunpack.c.h.bf16 %v922
        %v954 = vunpack.c.l.bf16 %v923
        %v955 = vunpack.c.h.bf16 %v923
        %956 = vmatpush.msra.mxu0 %v954
        %957 = vmatpush.msra.mxu0 %v952
        %958 = vmatpush.msra.mxu0 %v950
        %959 = vmatpush.msra.mxu0 %v948
        %960 = vmatpush.msra.mxu0 %v946
        %961 = vmatpush.msra.mxu0 %v944
        %962 = vmatpush.msra.mxu0 %v942
        %963 = vmatpush.msra.mxu0 %v940
        %964 = vmatpush.msra.mxu0 %v938
        %965 = vmatpush.msra.mxu0 %v936
        %966 = vmatpush.msra.mxu0 %v934
        %967 = vmatpush.msra.mxu0 %v932
        %968 = vmatpush.msra.mxu0 %v930
        %969 = vmatpush.msra.mxu0 %v928
        %970 = vmatpush.msra.mxu0 %v926
        %971 = vmatpush.msra.mxu0 %v924
        %972 = vmatmul.f32.gmra.mxu0 %v538
        %v973 = vpop.f32.mrf.mxu0
        %v974 = vadd.f32 0.0, %v973
        %975 = vdwg.mxu0
        %976 = vmatpush.msra.mxu0 %v955
        %977 = vmatpush.msra.mxu0 %v953
        %978 = vmatpush.msra.mxu0 %v951
        %979 = vmatpush.msra.mxu0 %v949
        %980 = vmatpush.msra.mxu0 %v947
        %981 = vmatpush.msra.mxu0 %v945
        %982 = vmatpush.msra.mxu0 %v943
        %983 = vmatpush.msra.mxu0 %v941
        %984 = vmatpush.msra.mxu0 %v939
        %985 = vmatpush.msra.mxu0 %v937
        %986 = vmatpush.msra.mxu0 %v935
        %987 = vmatpush.msra.mxu0 %v933
        %988 = vmatpush.msra.mxu0 %v931
        %989 = vmatpush.msra.mxu0 %v929
        %990 = vmatpush.msra.mxu0 %v927
        %991 = vmatpush.msra.mxu0 %v925
        %992 = vmatmul.f32.gmra.mxu0 %v538
        %v993 = vpop.f32.mrf.mxu0
        %v994 = vadd.f32 0.0, %v993
        %995 = vdwg.mxu0
        %v996 = vadd.f32 %v905, %v974
        %v997 = vadd.f32 %v906, %v994
        %s998 = scalar_lea.vmem %s386, 640 [#allocation9]
        %v999 = vld [vmem:[%s998] sm:$0xff]
        %v1000 = vld [vmem:[%s998 + $0x8] sm:$0xff]
        %v1001 = vld [vmem:[%s998 + $0x10] sm:$0xff]
        %v1002 = vld [vmem:[%s998 + $0x18] sm:$0xff]
        %v1003 = vld [vmem:[%s998 + $0x20] sm:$0xff]
        %v1004 = vld [vmem:[%s998 + $0x28] sm:$0xff]
        %v1005 = vld [vmem:[%s998 + $0x30] sm:$0xff]
        %v1006 = vld [vmem:[%s998 + $0x38] sm:$0xff]
        %v1007 = vld [vmem:[%s998 + $0x40] sm:$0xff]
        %v1008 = vld [vmem:[%s998 + $0x48] sm:$0xff]
        %v1009 = vld [vmem:[%s998 + $0x50] sm:$0xff]
        %v1010 = vld [vmem:[%s998 + $0x58] sm:$0xff]
        %v1011 = vld [vmem:[%s998 + $0x60] sm:$0xff]
        %v1012 = vld [vmem:[%s998 + $0x68] sm:$0xff]
        %v1013 = vld [vmem:[%s998 + $0x70] sm:$0xff]
        %v1014 = vld [vmem:[%s998 + $0x78] sm:$0xff]
        %v1015 = vunpack.c.l.bf16 %v999
        %v1016 = vunpack.c.h.bf16 %v999
        %v1017 = vunpack.c.l.bf16 %v1000
        %v1018 = vunpack.c.h.bf16 %v1000
        %v1019 = vunpack.c.l.bf16 %v1001
        %v1020 = vunpack.c.h.bf16 %v1001
        %v1021 = vunpack.c.l.bf16 %v1002
        %v1022 = vunpack.c.h.bf16 %v1002
        %v1023 = vunpack.c.l.bf16 %v1003
        %v1024 = vunpack.c.h.bf16 %v1003
        %v1025 = vunpack.c.l.bf16 %v1004
        %v1026 = vunpack.c.h.bf16 %v1004
        %v1027 = vunpack.c.l.bf16 %v1005
        %v1028 = vunpack.c.h.bf16 %v1005
        %v1029 = vunpack.c.l.bf16 %v1006
        %v1030 = vunpack.c.h.bf16 %v1006
        %v1031 = vunpack.c.l.bf16 %v1007
        %v1032 = vunpack.c.h.bf16 %v1007
        %v1033 = vunpack.c.l.bf16 %v1008
        %v1034 = vunpack.c.h.bf16 %v1008
        %v1035 = vunpack.c.l.bf16 %v1009
        %v1036 = vunpack.c.h.bf16 %v1009
        %v1037 = vunpack.c.l.bf16 %v1010
        %v1038 = vunpack.c.h.bf16 %v1010
        %v1039 = vunpack.c.l.bf16 %v1011
        %v1040 = vunpack.c.h.bf16 %v1011
        %v1041 = vunpack.c.l.bf16 %v1012
        %v1042 = vunpack.c.h.bf16 %v1012
        %v1043 = vunpack.c.l.bf16 %v1013
        %v1044 = vunpack.c.h.bf16 %v1013
        %v1045 = vunpack.c.l.bf16 %v1014
        %v1046 = vunpack.c.h.bf16 %v1014
        %v1048 = vrot.slane %v538, 2
        %1050 = vmatpush.msra.mxu0 %v1045
        %1051 = vmatpush.msra.mxu0 %v1043
        %1052 = vmatpush.msra.mxu0 %v1041
        %1053 = vmatpush.msra.mxu0 %v1039
        %1054 = vmatpush.msra.mxu0 %v1037
        %1055 = vmatpush.msra.mxu0 %v1035
        %1056 = vmatpush.msra.mxu0 %v1033
        %1057 = vmatpush.msra.mxu0 %v1031
        %1058 = vmatpush.msra.mxu0 %v1029
        %1059 = vmatpush.msra.mxu0 %v1027
        %1060 = vmatpush.msra.mxu0 %v1025
        %1061 = vmatpush.msra.mxu0 %v1023
        %1062 = vmatpush.msra.mxu0 %v1021
        %1063 = vmatpush.msra.mxu0 %v1019
        %1064 = vmatpush.msra.mxu0 %v1017
        %1065 = vmatpush.msra.mxu0 %v1015
        %1066 = vmatmul.f32.gmra.mxu0 %v1048
        %v1067 = vpop.f32.mrf.mxu0
        %v1068 = vadd.f32 0.0, %v1067
        %1069 = vdwg.mxu0
        %1070 = vmatpush.msra.mxu0 %v1046
        %1071 = vmatpush.msra.mxu0 %v1044
        %1072 = vmatpush.msra.mxu0 %v1042
        %1073 = vmatpush.msra.mxu0 %v1040
        %1074 = vmatpush.msra.mxu0 %v1038
        %1075 = vmatpush.msra.mxu0 %v1036
        %1076 = vmatpush.msra.mxu0 %v1034
        %1077 = vmatpush.msra.mxu0 %v1032
        %1078 = vmatpush.msra.mxu0 %v1030
        %1079 = vmatpush.msra.mxu0 %v1028
        %1080 = vmatpush.msra.mxu0 %v1026
        %1081 = vmatpush.msra.mxu0 %v1024
        %1082 = vmatpush.msra.mxu0 %v1022
        %1083 = vmatpush.msra.mxu0 %v1020
        %1084 = vmatpush.msra.mxu0 %v1018
        %1085 = vmatpush.msra.mxu0 %v1016
        %1086 = vmatmul.f32.gmra.mxu0 %v1048
        %v1087 = vpop.f32.mrf.mxu0
        %v1088 = vadd.f32 0.0, %v1087
        %1089 = vdwg.mxu0
        %v1090 = vadd.f32 %v996, %v1068
        %v1091 = vadd.f32 %v997, %v1088
        %s1092 = scalar_lea.vmem %s386, 768 [#allocation9]
        %v1093 = vld [vmem:[%s1092] sm:$0xff]
        %v1094 = vld [vmem:[%s1092 + $0x8] sm:$0xff]
        %v1095 = vld [vmem:[%s1092 + $0x10] sm:$0xff]
        %v1096 = vld [vmem:[%s1092 + $0x18] sm:$0xff]
        %v1097 = vld [vmem:[%s1092 + $0x20] sm:$0xff]
        %v1098 = vld [vmem:[%s1092 + $0x28] sm:$0xff]
        %v1099 = vld [vmem:[%s1092 + $0x30] sm:$0xff]
        %v1100 = vld [vmem:[%s1092 + $0x38] sm:$0xff]
        %v1101 = vld [vmem:[%s1092 + $0x40] sm:$0xff]
        %v1102 = vld [vmem:[%s1092 + $0x48] sm:$0xff]
        %v1103 = vld [vmem:[%s1092 + $0x50] sm:$0xff]
        %v1104 = vld [vmem:[%s1092 + $0x58] sm:$0xff]
        %v1105 = vld [vmem:[%s1092 + $0x60] sm:$0xff]
        %v1106 = vld [vmem:[%s1092 + $0x68] sm:$0xff]
        %v1107 = vld [vmem:[%s1092 + $0x70] sm:$0xff]
        %v1108 = vld [vmem:[%s1092 + $0x78] sm:$0xff]
        %v1109 = vunpack.c.l.bf16 %v1093
        %v1110 = vunpack.c.h.bf16 %v1093
        %v1111 = vunpack.c.l.bf16 %v1094
        %v1112 = vunpack.c.h.bf16 %v1094
        %v1113 = vunpack.c.l.bf16 %v1095
        %v1114 = vunpack.c.h.bf16 %v1095
        %v1115 = vunpack.c.l.bf16 %v1096
        %v1116 = vunpack.c.h.bf16 %v1096
        %v1117 = vunpack.c.l.bf16 %v1097
        %v1118 = vunpack.c.h.bf16 %v1097
        %v1119 = vunpack.c.l.bf16 %v1098
        %v1120 = vunpack.c.h.bf16 %v1098
        %v1121 = vunpack.c.l.bf16 %v1099
        %v1122 = vunpack.c.h.bf16 %v1099
        %v1123 = vunpack.c.l.bf16 %v1100
        %v1124 = vunpack.c.h.bf16 %v1100
        %v1125 = vunpack.c.l.bf16 %v1101
        %v1126 = vunpack.c.h.bf16 %v1101
        %v1127 = vunpack.c.l.bf16 %v1102
        %v1128 = vunpack.c.h.bf16 %v1102
        %v1129 = vunpack.c.l.bf16 %v1103
        %v1130 = vunpack.c.h.bf16 %v1103
        %v1131 = vunpack.c.l.bf16 %v1104
        %v1132 = vunpack.c.h.bf16 %v1104
        %v1133 = vunpack.c.l.bf16 %v1105
        %v1134 = vunpack.c.h.bf16 %v1105
        %v1135 = vunpack.c.l.bf16 %v1106
        %v1136 = vunpack.c.h.bf16 %v1106
        %v1137 = vunpack.c.l.bf16 %v1107
        %v1138 = vunpack.c.h.bf16 %v1107
        %v1139 = vunpack.c.l.bf16 %v1108
        %v1140 = vunpack.c.h.bf16 %v1108
        %v1141 = vrot.slane %v538, 4
        %1143 = vmatpush.msra.mxu0 %v1139
        %1144 = vmatpush.msra.mxu0 %v1137
        %1145 = vmatpush.msra.mxu0 %v1135
        %1146 = vmatpush.msra.mxu0 %v1133
        %1147 = vmatpush.msra.mxu0 %v1131
        %1148 = vmatpush.msra.mxu0 %v1129
        %1149 = vmatpush.msra.mxu0 %v1127
        %1150 = vmatpush.msra.mxu0 %v1125
        %1151 = vmatpush.msra.mxu0 %v1123
        %1152 = vmatpush.msra.mxu0 %v1121
        %1153 = vmatpush.msra.mxu0 %v1119
        %1154 = vmatpush.msra.mxu0 %v1117
        %1155 = vmatpush.msra.mxu0 %v1115
        %1156 = vmatpush.msra.mxu0 %v1113
        %1157 = vmatpush.msra.mxu0 %v1111
        %1158 = vmatpush.msra.mxu0 %v1109
        %1159 = vmatmul.f32.gmra.mxu0 %v1141
        %v1160 = vpop.f32.mrf.mxu0
        %v1161 = vadd.f32 0.0, %v1160
        %1162 = vdwg.mxu0
        %1163 = vmatpush.msra.mxu0 %v1140
        %1164 = vmatpush.msra.mxu0 %v1138
        %1165 = vmatpush.msra.mxu0 %v1136
        %1166 = vmatpush.msra.mxu0 %v1134
        %1167 = vmatpush.msra.mxu0 %v1132
        %1168 = vmatpush.msra.mxu0 %v1130
        %1169 = vmatpush.msra.mxu0 %v1128
        %1170 = vmatpush.msra.mxu0 %v1126
        %1171 = vmatpush.msra.mxu0 %v1124
        %1172 = vmatpush.msra.mxu0 %v1122
        %1173 = vmatpush.msra.mxu0 %v1120
        %1174 = vmatpush.msra.mxu0 %v1118
        %1175 = vmatpush.msra.mxu0 %v1116
        %1176 = vmatpush.msra.mxu0 %v1114
        %1177 = vmatpush.msra.mxu0 %v1112
        %1178 = vmatpush.msra.mxu0 %v1110
        %1179 = vmatmul.f32.gmra.mxu0 %v1141
        %v1180 = vpop.f32.mrf.mxu0
        %v1181 = vadd.f32 0.0, %v1180
        %1182 = vdwg.mxu0
        %v1183 = vadd.f32 %v1090, %v1161
        %v1184 = vadd.f32 %v1091, %v1181
        %s1185 = scalar_lea.vmem %s386, 896 [#allocation9]
        %v1186 = vld [vmem:[%s1185] sm:$0xff]
        %v1187 = vld [vmem:[%s1185 + $0x8] sm:$0xff]
        %v1188 = vld [vmem:[%s1185 + $0x10] sm:$0xff]
        %v1189 = vld [vmem:[%s1185 + $0x18] sm:$0xff]
        %v1190 = vld [vmem:[%s1185 + $0x20] sm:$0xff]
        %v1191 = vld [vmem:[%s1185 + $0x28] sm:$0xff]
        %v1192 = vld [vmem:[%s1185 + $0x30] sm:$0xff]
        %v1193 = vld [vmem:[%s1185 + $0x38] sm:$0xff]
        %v1194 = vld [vmem:[%s1185 + $0x40] sm:$0xff]
        %v1195 = vld [vmem:[%s1185 + $0x48] sm:$0xff]
        %v1196 = vld [vmem:[%s1185 + $0x50] sm:$0xff]
        %v1197 = vld [vmem:[%s1185 + $0x58] sm:$0xff]
        %v1198 = vld [vmem:[%s1185 + $0x60] sm:$0xff]
        %v1199 = vld [vmem:[%s1185 + $0x68] sm:$0xff]
        %v1200 = vld [vmem:[%s1185 + $0x70] sm:$0xff]
        %v1201 = vld [vmem:[%s1185 + $0x78] sm:$0xff]
        %v1202 = vunpack.c.l.bf16 %v1186
        %v1203 = vunpack.c.h.bf16 %v1186
        %v1204 = vunpack.c.l.bf16 %v1187
        %v1205 = vunpack.c.h.bf16 %v1187
        %v1206 = vunpack.c.l.bf16 %v1188
        %v1207 = vunpack.c.h.bf16 %v1188
        %v1208 = vunpack.c.l.bf16 %v1189
        %v1209 = vunpack.c.h.bf16 %v1189
        %v1210 = vunpack.c.l.bf16 %v1190
        %v1211 = vunpack.c.h.bf16 %v1190
        %v1212 = vunpack.c.l.bf16 %v1191
        %v1213 = vunpack.c.h.bf16 %v1191
        %v1214 = vunpack.c.l.bf16 %v1192
        %v1215 = vunpack.c.h.bf16 %v1192
        %v1216 = vunpack.c.l.bf16 %v1193
        %v1217 = vunpack.c.h.bf16 %v1193
        %v1218 = vunpack.c.l.bf16 %v1194
        %v1219 = vunpack.c.h.bf16 %v1194
        %v1220 = vunpack.c.l.bf16 %v1195
        %v1221 = vunpack.c.h.bf16 %v1195
        %v1222 = vunpack.c.l.bf16 %v1196
        %v1223 = vunpack.c.h.bf16 %v1196
        %v1224 = vunpack.c.l.bf16 %v1197
        %v1225 = vunpack.c.h.bf16 %v1197
        %v1226 = vunpack.c.l.bf16 %v1198
        %v1227 = vunpack.c.h.bf16 %v1198
        %v1228 = vunpack.c.l.bf16 %v1199
        %v1229 = vunpack.c.h.bf16 %v1199
        %v1230 = vunpack.c.l.bf16 %v1200
        %v1231 = vunpack.c.h.bf16 %v1200
        %v1232 = vunpack.c.l.bf16 %v1201
        %v1233 = vunpack.c.h.bf16 %v1201
        %v1234 = vrot.slane %v538, 6
        %1236 = vmatpush.msra.mxu0 %v1232
        %1237 = vmatpush.msra.mxu0 %v1230
        %1238 = vmatpush.msra.mxu0 %v1228
        %1239 = vmatpush.msra.mxu0 %v1226
        %1240 = vmatpush.msra.mxu0 %v1224
        %1241 = vmatpush.msra.mxu0 %v1222
        %1242 = vmatpush.msra.mxu0 %v1220
        %1243 = vmatpush.msra.mxu0 %v1218
        %1244 = vmatpush.msra.mxu0 %v1216
        %1245 = vmatpush.msra.mxu0 %v1214
        %1246 = vmatpush.msra.mxu0 %v1212
        %1247 = vmatpush.msra.mxu0 %v1210
        %1248 = vmatpush.msra.mxu0 %v1208
        %1249 = vmatpush.msra.mxu0 %v1206
        %1250 = vmatpush.msra.mxu0 %v1204
        %1251 = vmatpush.msra.mxu0 %v1202
        %1252 = vmatmul.f32.gmra.mxu0 %v1234
        %v1253 = vpop.f32.mrf.mxu0
        %v1254 = vadd.f32 0.0, %v1253
        %1255 = vdwg.mxu0
        %1256 = vmatpush.msra.mxu0 %v1233
        %1257 = vmatpush.msra.mxu0 %v1231
        %1258 = vmatpush.msra.mxu0 %v1229
        %1259 = vmatpush.msra.mxu0 %v1227
        %1260 = vmatpush.msra.mxu0 %v1225
        %1261 = vmatpush.msra.mxu0 %v1223
        %1262 = vmatpush.msra.mxu0 %v1221
        %1263 = vmatpush.msra.mxu0 %v1219
        %1264 = vmatpush.msra.mxu0 %v1217
        %1265 = vmatpush.msra.mxu0 %v1215
        %1266 = vmatpush.msra.mxu0 %v1213
        %1267 = vmatpush.msra.mxu0 %v1211
        %1268 = vmatpush.msra.mxu0 %v1209
        %1269 = vmatpush.msra.mxu0 %v1207
        %1270 = vmatpush.msra.mxu0 %v1205
        %1271 = vmatpush.msra.mxu0 %v1203
        %1272 = vmatmul.f32.gmra.mxu0 %v1234
        %v1273 = vpop.f32.mrf.mxu0
        %v1274 = vadd.f32 0.0, %v1273
        %1275 = vdwg.mxu0
        %v1276 = vadd.f32 %v1183, %v1254
        %v1277 = vadd.f32 %v1184, %v1274
        %s1278 = scalar_lea.vmem %s386, 1024 [#allocation9]
        %v1279 = vld [vmem:[%s1278] sm:$0xff]
        %v1280 = vld [vmem:[%s1278 + $0x8] sm:$0xff]
        %v1281 = vld [vmem:[%s1278 + $0x10] sm:$0xff]
        %v1282 = vld [vmem:[%s1278 + $0x18] sm:$0xff]
        %v1283 = vld [vmem:[%s1278 + $0x20] sm:$0xff]
        %v1284 = vld [vmem:[%s1278 + $0x28] sm:$0xff]
        %v1285 = vld [vmem:[%s1278 + $0x30] sm:$0xff]
        %v1286 = vld [vmem:[%s1278 + $0x38] sm:$0xff]
        %v1287 = vld [vmem:[%s1278 + $0x40] sm:$0xff]
        %v1288 = vld [vmem:[%s1278 + $0x48] sm:$0xff]
        %v1289 = vld [vmem:[%s1278 + $0x50] sm:$0xff]
        %v1290 = vld [vmem:[%s1278 + $0x58] sm:$0xff]
        %v1291 = vld [vmem:[%s1278 + $0x60] sm:$0xff]
        %v1292 = vld [vmem:[%s1278 + $0x68] sm:$0xff]
        %v1293 = vld [vmem:[%s1278 + $0x70] sm:$0xff]
        %v1294 = vld [vmem:[%s1278 + $0x78] sm:$0xff]
        %v1295 = vunpack.c.l.bf16 %v1279
        %v1296 = vunpack.c.h.bf16 %v1279
        %v1297 = vunpack.c.l.bf16 %v1280
        %v1298 = vunpack.c.h.bf16 %v1280
        %v1299 = vunpack.c.l.bf16 %v1281
        %v1300 = vunpack.c.h.bf16 %v1281
        %v1301 = vunpack.c.l.bf16 %v1282
        %v1302 = vunpack.c.h.bf16 %v1282
        %v1303 = vunpack.c.l.bf16 %v1283
        %v1304 = vunpack.c.h.bf16 %v1283
        %v1305 = vunpack.c.l.bf16 %v1284
        %v1306 = vunpack.c.h.bf16 %v1284
        %v1307 = vunpack.c.l.bf16 %v1285
        %v1308 = vunpack.c.h.bf16 %v1285
        %v1309 = vunpack.c.l.bf16 %v1286
        %v1310 = vunpack.c.h.bf16 %v1286
        %v1311 = vunpack.c.l.bf16 %v1287
        %v1312 = vunpack.c.h.bf16 %v1287
        %v1313 = vunpack.c.l.bf16 %v1288
        %v1314 = vunpack.c.h.bf16 %v1288
        %v1315 = vunpack.c.l.bf16 %v1289
        %v1316 = vunpack.c.h.bf16 %v1289
        %v1317 = vunpack.c.l.bf16 %v1290
        %v1318 = vunpack.c.h.bf16 %v1290
        %v1319 = vunpack.c.l.bf16 %v1291
        %v1320 = vunpack.c.h.bf16 %v1291
        %v1321 = vunpack.c.l.bf16 %v1292
        %v1322 = vunpack.c.h.bf16 %v1292
        %v1323 = vunpack.c.l.bf16 %v1293
        %v1324 = vunpack.c.h.bf16 %v1293
        %v1325 = vunpack.c.l.bf16 %v1294
        %v1326 = vunpack.c.h.bf16 %v1294
        %1327 = vmatpush.msra.mxu0 %v1325
        %1328 = vmatpush.msra.mxu0 %v1323
        %1329 = vmatpush.msra.mxu0 %v1321
        %1330 = vmatpush.msra.mxu0 %v1319
        %1331 = vmatpush.msra.mxu0 %v1317
        %1332 = vmatpush.msra.mxu0 %v1315
        %1333 = vmatpush.msra.mxu0 %v1313
        %1334 = vmatpush.msra.mxu0 %v1311
        %1335 = vmatpush.msra.mxu0 %v1309
        %1336 = vmatpush.msra.mxu0 %v1307
        %1337 = vmatpush.msra.mxu0 %v1305
        %1338 = vmatpush.msra.mxu0 %v1303
        %1339 = vmatpush.msra.mxu0 %v1301
        %1340 = vmatpush.msra.mxu0 %v1299
        %1341 = vmatpush.msra.mxu0 %v1297
        %1342 = vmatpush.msra.mxu0 %v1295
        %1343 = vmatmul.f32.gmra.mxu0 %v539
        %v1344 = vpop.f32.mrf.mxu0
        %v1345 = vadd.f32 0.0, %v1344
        %1346 = vdwg.mxu0
        %1347 = vmatpush.msra.mxu0 %v1326
        %1348 = vmatpush.msra.mxu0 %v1324
        %1349 = vmatpush.msra.mxu0 %v1322
        %1350 = vmatpush.msra.mxu0 %v1320
        %1351 = vmatpush.msra.mxu0 %v1318
        %1352 = vmatpush.msra.mxu0 %v1316
        %1353 = vmatpush.msra.mxu0 %v1314
        %1354 = vmatpush.msra.mxu0 %v1312
        %1355 = vmatpush.msra.mxu0 %v1310
        %1356 = vmatpush.msra.mxu0 %v1308
        %1357 = vmatpush.msra.mxu0 %v1306
        %1358 = vmatpush.msra.mxu0 %v1304
        %1359 = vmatpush.msra.mxu0 %v1302
        %1360 = vmatpush.msra.mxu0 %v1300
        %1361 = vmatpush.msra.mxu0 %v1298
        %1362 = vmatpush.msra.mxu0 %v1296
        %1363 = vmatmul.f32.gmra.mxu0 %v539
        %v1364 = vpop.f32.mrf.mxu0
        %v1365 = vadd.f32 0.0, %v1364
        %1366 = vdwg.mxu0
        %v1367 = vadd.f32 %v1276, %v1345
        %v1368 = vadd.f32 %v1277, %v1365
        %s1369 = scalar_lea.vmem %s386, 1152 [#allocation9]
        %v1370 = vld [vmem:[%s1369] sm:$0xff]
        %v1371 = vld [vmem:[%s1369 + $0x8] sm:$0xff]
        %v1372 = vld [vmem:[%s1369 + $0x10] sm:$0xff]
        %v1373 = vld [vmem:[%s1369 + $0x18] sm:$0xff]
        %v1374 = vld [vmem:[%s1369 + $0x20] sm:$0xff]
        %v1375 = vld [vmem:[%s1369 + $0x28] sm:$0xff]
        %v1376 = vld [vmem:[%s1369 + $0x30] sm:$0xff]
        %v1377 = vld [vmem:[%s1369 + $0x38] sm:$0xff]
        %v1378 = vld [vmem:[%s1369 + $0x40] sm:$0xff]
        %v1379 = vld [vmem:[%s1369 + $0x48] sm:$0xff]
        %v1380 = vld [vmem:[%s1369 + $0x50] sm:$0xff]
        %v1381 = vld [vmem:[%s1369 + $0x58] sm:$0xff]
        %v1382 = vld [vmem:[%s1369 + $0x60] sm:$0xff]
        %v1383 = vld [vmem:[%s1369 + $0x68] sm:$0xff]
        %v1384 = vld [vmem:[%s1369 + $0x70] sm:$0xff]
        %v1385 = vld [vmem:[%s1369 + $0x78] sm:$0xff]
        %v1386 = vunpack.c.l.bf16 %v1370
        %v1387 = vunpack.c.h.bf16 %v1370
        %v1388 = vunpack.c.l.bf16 %v1371
        %v1389 = vunpack.c.h.bf16 %v1371
        %v1390 = vunpack.c.l.bf16 %v1372
        %v1391 = vunpack.c.h.bf16 %v1372
        %v1392 = vunpack.c.l.bf16 %v1373
        %v1393 = vunpack.c.h.bf16 %v1373
        %v1394 = vunpack.c.l.bf16 %v1374
        %v1395 = vunpack.c.h.bf16 %v1374
        %v1396 = vunpack.c.l.bf16 %v1375
        %v1397 = vunpack.c.h.bf16 %v1375
        %v1398 = vunpack.c.l.bf16 %v1376
        %v1399 = vunpack.c.h.bf16 %v1376
        %v1400 = vunpack.c.l.bf16 %v1377
        %v1401 = vunpack.c.h.bf16 %v1377
        %v1402 = vunpack.c.l.bf16 %v1378
        %v1403 = vunpack.c.h.bf16 %v1378
        %v1404 = vunpack.c.l.bf16 %v1379
        %v1405 = vunpack.c.h.bf16 %v1379
        %v1406 = vunpack.c.l.bf16 %v1380
        %v1407 = vunpack.c.h.bf16 %v1380
        %v1408 = vunpack.c.l.bf16 %v1381
        %v1409 = vunpack.c.h.bf16 %v1381
        %v1410 = vunpack.c.l.bf16 %v1382
        %v1411 = vunpack.c.h.bf16 %v1382
        %v1412 = vunpack.c.l.bf16 %v1383
        %v1413 = vunpack.c.h.bf16 %v1383
        %v1414 = vunpack.c.l.bf16 %v1384
        %v1415 = vunpack.c.h.bf16 %v1384
        %v1416 = vunpack.c.l.bf16 %v1385
        %v1417 = vunpack.c.h.bf16 %v1385
        %v1419 = vrot.slane %v539, 2
        %1421 = vmatpush.msra.mxu0 %v1416
        %1422 = vmatpush.msra.mxu0 %v1414
        %1423 = vmatpush.msra.mxu0 %v1412
        %1424 = vmatpush.msra.mxu0 %v1410
        %1425 = vmatpush.msra.mxu0 %v1408
        %1426 = vmatpush.msra.mxu0 %v1406
        %1427 = vmatpush.msra.mxu0 %v1404
        %1428 = vmatpush.msra.mxu0 %v1402
        %1429 = vmatpush.msra.mxu0 %v1400
        %1430 = vmatpush.msra.mxu0 %v1398
        %1431 = vmatpush.msra.mxu0 %v1396
        %1432 = vmatpush.msra.mxu0 %v1394
        %1433 = vmatpush.msra.mxu0 %v1392
        %1434 = vmatpush.msra.mxu0 %v1390
        %1435 = vmatpush.msra.mxu0 %v1388
        %1436 = vmatpush.msra.mxu0 %v1386
        %1437 = vmatmul.f32.gmra.mxu0 %v1419
        %v1438 = vpop.f32.mrf.mxu0
        %v1439 = vadd.f32 0.0, %v1438
        %1440 = vdwg.mxu0
        %1441 = vmatpush.msra.mxu0 %v1417
        %1442 = vmatpush.msra.mxu0 %v1415
        %1443 = vmatpush.msra.mxu0 %v1413
        %1444 = vmatpush.msra.mxu0 %v1411
        %1445 = vmatpush.msra.mxu0 %v1409
        %1446 = vmatpush.msra.mxu0 %v1407
        %1447 = vmatpush.msra.mxu0 %v1405
        %1448 = vmatpush.msra.mxu0 %v1403
        %1449 = vmatpush.msra.mxu0 %v1401
        %1450 = vmatpush.msra.mxu0 %v1399
        %1451 = vmatpush.msra.mxu0 %v1397
        %1452 = vmatpush.msra.mxu0 %v1395
        %1453 = vmatpush.msra.mxu0 %v1393
        %1454 = vmatpush.msra.mxu0 %v1391
        %1455 = vmatpush.msra.mxu0 %v1389
        %1456 = vmatpush.msra.mxu0 %v1387
        %1457 = vmatmul.f32.gmra.mxu0 %v1419
        %v1458 = vpop.f32.mrf.mxu0
        %v1459 = vadd.f32 0.0, %v1458
        %1460 = vdwg.mxu0
        %v1461 = vadd.f32 %v1367, %v1439
        %v1462 = vadd.f32 %v1368, %v1459
        %s1463 = scalar_lea.vmem %s386, 1280 [#allocation9]
        %v1464 = vld [vmem:[%s1463] sm:$0xff]
        %v1465 = vld [vmem:[%s1463 + $0x8] sm:$0xff]
        %v1466 = vld [vmem:[%s1463 + $0x10] sm:$0xff]
        %v1467 = vld [vmem:[%s1463 + $0x18] sm:$0xff]
        %v1468 = vld [vmem:[%s1463 + $0x20] sm:$0xff]
        %v1469 = vld [vmem:[%s1463 + $0x28] sm:$0xff]
        %v1470 = vld [vmem:[%s1463 + $0x30] sm:$0xff]
        %v1471 = vld [vmem:[%s1463 + $0x38] sm:$0xff]
        %v1472 = vld [vmem:[%s1463 + $0x40] sm:$0xff]
        %v1473 = vld [vmem:[%s1463 + $0x48] sm:$0xff]
        %v1474 = vld [vmem:[%s1463 + $0x50] sm:$0xff]
        %v1475 = vld [vmem:[%s1463 + $0x58] sm:$0xff]
        %v1476 = vld [vmem:[%s1463 + $0x60] sm:$0xff]
        %v1477 = vld [vmem:[%s1463 + $0x68] sm:$0xff]
        %v1478 = vld [vmem:[%s1463 + $0x70] sm:$0xff]
        %v1479 = vld [vmem:[%s1463 + $0x78] sm:$0xff]
        %v1480 = vunpack.c.l.bf16 %v1464
        %v1481 = vunpack.c.h.bf16 %v1464
        %v1482 = vunpack.c.l.bf16 %v1465
        %v1483 = vunpack.c.h.bf16 %v1465
        %v1484 = vunpack.c.l.bf16 %v1466
        %v1485 = vunpack.c.h.bf16 %v1466
        %v1486 = vunpack.c.l.bf16 %v1467
        %v1487 = vunpack.c.h.bf16 %v1467
        %v1488 = vunpack.c.l.bf16 %v1468
        %v1489 = vunpack.c.h.bf16 %v1468
        %v1490 = vunpack.c.l.bf16 %v1469
        %v1491 = vunpack.c.h.bf16 %v1469
        %v1492 = vunpack.c.l.bf16 %v1470
        %v1493 = vunpack.c.h.bf16 %v1470
        %v1494 = vunpack.c.l.bf16 %v1471
        %v1495 = vunpack.c.h.bf16 %v1471
        %v1496 = vunpack.c.l.bf16 %v1472
        %v1497 = vunpack.c.h.bf16 %v1472
        %v1498 = vunpack.c.l.bf16 %v1473
        %v1499 = vunpack.c.h.bf16 %v1473
        %v1500 = vunpack.c.l.bf16 %v1474
        %v1501 = vunpack.c.h.bf16 %v1474
        %v1502 = vunpack.c.l.bf16 %v1475
        %v1503 = vunpack.c.h.bf16 %v1475
        %v1504 = vunpack.c.l.bf16 %v1476
        %v1505 = vunpack.c.h.bf16 %v1476
        %v1506 = vunpack.c.l.bf16 %v1477
        %v1507 = vunpack.c.h.bf16 %v1477
        %v1508 = vunpack.c.l.bf16 %v1478
        %v1509 = vunpack.c.h.bf16 %v1478
        %v1510 = vunpack.c.l.bf16 %v1479
        %v1511 = vunpack.c.h.bf16 %v1479
        %v1512 = vrot.slane %v539, 4
        %1514 = vmatpush.msra.mxu0 %v1510
        %1515 = vmatpush.msra.mxu0 %v1508
        %1516 = vmatpush.msra.mxu0 %v1506
        %1517 = vmatpush.msra.mxu0 %v1504
        %1518 = vmatpush.msra.mxu0 %v1502
        %1519 = vmatpush.msra.mxu0 %v1500
        %1520 = vmatpush.msra.mxu0 %v1498
        %1521 = vmatpush.msra.mxu0 %v1496
        %1522 = vmatpush.msra.mxu0 %v1494
        %1523 = vmatpush.msra.mxu0 %v1492
        %1524 = vmatpush.msra.mxu0 %v1490
        %1525 = vmatpush.msra.mxu0 %v1488
        %1526 = vmatpush.msra.mxu0 %v1486
        %1527 = vmatpush.msra.mxu0 %v1484
        %1528 = vmatpush.msra.mxu0 %v1482
        %1529 = vmatpush.msra.mxu0 %v1480
        %1530 = vmatmul.f32.gmra.mxu0 %v1512
        %v1531 = vpop.f32.mrf.mxu0
        %v1532 = vadd.f32 0.0, %v1531
        %1533 = vdwg.mxu0
        %1534 = vmatpush.msra.mxu0 %v1511
        %1535 = vmatpush.msra.mxu0 %v1509
        %1536 = vmatpush.msra.mxu0 %v1507
        %1537 = vmatpush.msra.mxu0 %v1505
        %1538 = vmatpush.msra.mxu0 %v1503
        %1539 = vmatpush.msra.mxu0 %v1501
        %1540 = vmatpush.msra.mxu0 %v1499
        %1541 = vmatpush.msra.mxu0 %v1497
        %1542 = vmatpush.msra.mxu0 %v1495
        %1543 = vmatpush.msra.mxu0 %v1493
        %1544 = vmatpush.msra.mxu0 %v1491
        %1545 = vmatpush.msra.mxu0 %v1489
        %1546 = vmatpush.msra.mxu0 %v1487
        %1547 = vmatpush.msra.mxu0 %v1485
        %1548 = vmatpush.msra.mxu0 %v1483
        %1549 = vmatpush.msra.mxu0 %v1481
        %1550 = vmatmul.f32.gmra.mxu0 %v1512
        %v1551 = vpop.f32.mrf.mxu0
        %v1552 = vadd.f32 0.0, %v1551
        %1553 = vdwg.mxu0
        %v1554 = vadd.f32 %v1461, %v1532
        %v1555 = vadd.f32 %v1462, %v1552
        %s1556 = scalar_lea.vmem %s386, 1408 [#allocation9]
        %v1557 = vld [vmem:[%s1556] sm:$0xff]
        %v1558 = vld [vmem:[%s1556 + $0x8] sm:$0xff]
        %v1559 = vld [vmem:[%s1556 + $0x10] sm:$0xff]
        %v1560 = vld [vmem:[%s1556 + $0x18] sm:$0xff]
        %v1561 = vld [vmem:[%s1556 + $0x20] sm:$0xff]
        %v1562 = vld [vmem:[%s1556 + $0x28] sm:$0xff]
        %v1563 = vld [vmem:[%s1556 + $0x30] sm:$0xff]
        %v1564 = vld [vmem:[%s1556 + $0x38] sm:$0xff]
        %v1565 = vld [vmem:[%s1556 + $0x40] sm:$0xff]
        %v1566 = vld [vmem:[%s1556 + $0x48] sm:$0xff]
        %v1567 = vld [vmem:[%s1556 + $0x50] sm:$0xff]
        %v1568 = vld [vmem:[%s1556 + $0x58] sm:$0xff]
        %v1569 = vld [vmem:[%s1556 + $0x60] sm:$0xff]
        %v1570 = vld [vmem:[%s1556 + $0x68] sm:$0xff]
        %v1571 = vld [vmem:[%s1556 + $0x70] sm:$0xff]
        %v1572 = vld [vmem:[%s1556 + $0x78] sm:$0xff]
        %v1573 = vunpack.c.l.bf16 %v1557
        %v1574 = vunpack.c.h.bf16 %v1557
        %v1575 = vunpack.c.l.bf16 %v1558
        %v1576 = vunpack.c.h.bf16 %v1558
        %v1577 = vunpack.c.l.bf16 %v1559
        %v1578 = vunpack.c.h.bf16 %v1559
        %v1579 = vunpack.c.l.bf16 %v1560
        %v1580 = vunpack.c.h.bf16 %v1560
        %v1581 = vunpack.c.l.bf16 %v1561
        %v1582 = vunpack.c.h.bf16 %v1561
        %v1583 = vunpack.c.l.bf16 %v1562
        %v1584 = vunpack.c.h.bf16 %v1562
        %v1585 = vunpack.c.l.bf16 %v1563
        %v1586 = vunpack.c.h.bf16 %v1563
        %v1587 = vunpack.c.l.bf16 %v1564
        %v1588 = vunpack.c.h.bf16 %v1564
        %v1589 = vunpack.c.l.bf16 %v1565
        %v1590 = vunpack.c.h.bf16 %v1565
        %v1591 = vunpack.c.l.bf16 %v1566
        %v1592 = vunpack.c.h.bf16 %v1566
        %v1593 = vunpack.c.l.bf16 %v1567
        %v1594 = vunpack.c.h.bf16 %v1567
        %v1595 = vunpack.c.l.bf16 %v1568
        %v1596 = vunpack.c.h.bf16 %v1568
        %v1597 = vunpack.c.l.bf16 %v1569
        %v1598 = vunpack.c.h.bf16 %v1569
        %v1599 = vunpack.c.l.bf16 %v1570
        %v1600 = vunpack.c.h.bf16 %v1570
        %v1601 = vunpack.c.l.bf16 %v1571
        %v1602 = vunpack.c.h.bf16 %v1571
        %v1603 = vunpack.c.l.bf16 %v1572
        %v1604 = vunpack.c.h.bf16 %v1572
        %v1605 = vrot.slane %v539, 6
        %1607 = vmatpush.msra.mxu0 %v1603
        %1608 = vmatpush.msra.mxu0 %v1601
        %1609 = vmatpush.msra.mxu0 %v1599
        %1610 = vmatpush.msra.mxu0 %v1597
        %1611 = vmatpush.msra.mxu0 %v1595
        %1612 = vmatpush.msra.mxu0 %v1593
        %1613 = vmatpush.msra.mxu0 %v1591
        %1614 = vmatpush.msra.mxu0 %v1589
        %1615 = vmatpush.msra.mxu0 %v1587
        %1616 = vmatpush.msra.mxu0 %v1585
        %1617 = vmatpush.msra.mxu0 %v1583
        %1618 = vmatpush.msra.mxu0 %v1581
        %1619 = vmatpush.msra.mxu0 %v1579
        %1620 = vmatpush.msra.mxu0 %v1577
        %1621 = vmatpush.msra.mxu0 %v1575
        %1622 = vmatpush.msra.mxu0 %v1573
        %1623 = vmatmul.f32.gmra.mxu0 %v1605
        %v1624 = vpop.f32.mrf.mxu0
        %v1625 = vadd.f32 0.0, %v1624
        %1626 = vdwg.mxu0
        %1627 = vmatpush.msra.mxu0 %v1604
        %1628 = vmatpush.msra.mxu0 %v1602
        %1629 = vmatpush.msra.mxu0 %v1600
        %1630 = vmatpush.msra.mxu0 %v1598
        %1631 = vmatpush.msra.mxu0 %v1596
        %1632 = vmatpush.msra.mxu0 %v1594
        %1633 = vmatpush.msra.mxu0 %v1592
        %1634 = vmatpush.msra.mxu0 %v1590
        %1635 = vmatpush.msra.mxu0 %v1588
        %1636 = vmatpush.msra.mxu0 %v1586
        %1637 = vmatpush.msra.mxu0 %v1584
        %1638 = vmatpush.msra.mxu0 %v1582
        %1639 = vmatpush.msra.mxu0 %v1580
        %1640 = vmatpush.msra.mxu0 %v1578
        %1641 = vmatpush.msra.mxu0 %v1576
        %1642 = vmatpush.msra.mxu0 %v1574
        %1643 = vmatmul.f32.gmra.mxu0 %v1605
        %v1644 = vpop.f32.mrf.mxu0
        %v1645 = vadd.f32 0.0, %v1644
        %1646 = vdwg.mxu0
        %v1647 = vadd.f32 %v1554, %v1625
        %v1648 = vadd.f32 %v1555, %v1645
        %s1649 = scalar_lea.vmem %s386, 1536 [#allocation9]
        %v1650 = vld [vmem:[%s1649] sm:$0xff]
        %v1651 = vld [vmem:[%s1649 + $0x8] sm:$0xff]
        %v1652 = vld [vmem:[%s1649 + $0x10] sm:$0xff]
        %v1653 = vld [vmem:[%s1649 + $0x18] sm:$0xff]
        %v1654 = vld [vmem:[%s1649 + $0x20] sm:$0xff]
        %v1655 = vld [vmem:[%s1649 + $0x28] sm:$0xff]
        %v1656 = vld [vmem:[%s1649 + $0x30] sm:$0xff]
        %v1657 = vld [vmem:[%s1649 + $0x38] sm:$0xff]
        %v1658 = vld [vmem:[%s1649 + $0x40] sm:$0xff]
        %v1659 = vld [vmem:[%s1649 + $0x48] sm:$0xff]
        %v1660 = vld [vmem:[%s1649 + $0x50] sm:$0xff]
        %v1661 = vld [vmem:[%s1649 + $0x58] sm:$0xff]
        %v1662 = vld [vmem:[%s1649 + $0x60] sm:$0xff]
        %v1663 = vld [vmem:[%s1649 + $0x68] sm:$0xff]
        %v1664 = vld [vmem:[%s1649 + $0x70] sm:$0xff]
        %v1665 = vld [vmem:[%s1649 + $0x78] sm:$0xff]
        %v1666 = vunpack.c.l.bf16 %v1650
        %v1667 = vunpack.c.h.bf16 %v1650
        %v1668 = vunpack.c.l.bf16 %v1651
        %v1669 = vunpack.c.h.bf16 %v1651
        %v1670 = vunpack.c.l.bf16 %v1652
        %v1671 = vunpack.c.h.bf16 %v1652
        %v1672 = vunpack.c.l.bf16 %v1653
        %v1673 = vunpack.c.h.bf16 %v1653
        %v1674 = vunpack.c.l.bf16 %v1654
        %v1675 = vunpack.c.h.bf16 %v1654
        %v1676 = vunpack.c.l.bf16 %v1655
        %v1677 = vunpack.c.h.bf16 %v1655
        %v1678 = vunpack.c.l.bf16 %v1656
        %v1679 = vunpack.c.h.bf16 %v1656
        %v1680 = vunpack.c.l.bf16 %v1657
        %v1681 = vunpack.c.h.bf16 %v1657
        %v1682 = vunpack.c.l.bf16 %v1658
        %v1683 = vunpack.c.h.bf16 %v1658
        %v1684 = vunpack.c.l.bf16 %v1659
        %v1685 = vunpack.c.h.bf16 %v1659
        %v1686 = vunpack.c.l.bf16 %v1660
        %v1687 = vunpack.c.h.bf16 %v1660
        %v1688 = vunpack.c.l.bf16 %v1661
        %v1689 = vunpack.c.h.bf16 %v1661
        %v1690 = vunpack.c.l.bf16 %v1662
        %v1691 = vunpack.c.h.bf16 %v1662
        %v1692 = vunpack.c.l.bf16 %v1663
        %v1693 = vunpack.c.h.bf16 %v1663
        %v1694 = vunpack.c.l.bf16 %v1664
        %v1695 = vunpack.c.h.bf16 %v1664
        %v1696 = vunpack.c.l.bf16 %v1665
        %v1697 = vunpack.c.h.bf16 %v1665
        %1698 = vmatpush.msra.mxu0 %v1696
        %1699 = vmatpush.msra.mxu0 %v1694
        %1700 = vmatpush.msra.mxu0 %v1692
        %1701 = vmatpush.msra.mxu0 %v1690
        %1702 = vmatpush.msra.mxu0 %v1688
        %1703 = vmatpush.msra.mxu0 %v1686
        %1704 = vmatpush.msra.mxu0 %v1684
        %1705 = vmatpush.msra.mxu0 %v1682
        %1706 = vmatpush.msra.mxu0 %v1680
        %1707 = vmatpush.msra.mxu0 %v1678
        %1708 = vmatpush.msra.mxu0 %v1676
        %1709 = vmatpush.msra.mxu0 %v1674
        %1710 = vmatpush.msra.mxu0 %v1672
        %1711 = vmatpush.msra.mxu0 %v1670
        %1712 = vmatpush.msra.mxu0 %v1668
        %1713 = vmatpush.msra.mxu0 %v1666
        %1714 = vmatmul.f32.gmra.mxu0 %v540
        %v1715 = vpop.f32.mrf.mxu0
        %v1716 = vadd.f32 0.0, %v1715
        %1717 = vdwg.mxu0
        %1718 = vmatpush.msra.mxu0 %v1697
        %1719 = vmatpush.msra.mxu0 %v1695
        %1720 = vmatpush.msra.mxu0 %v1693
        %1721 = vmatpush.msra.mxu0 %v1691
        %1722 = vmatpush.msra.mxu0 %v1689
        %1723 = vmatpush.msra.mxu0 %v1687
        %1724 = vmatpush.msra.mxu0 %v1685
        %1725 = vmatpush.msra.mxu0 %v1683
        %1726 = vmatpush.msra.mxu0 %v1681
        %1727 = vmatpush.msra.mxu0 %v1679
        %1728 = vmatpush.msra.mxu0 %v1677
        %1729 = vmatpush.msra.mxu0 %v1675
        %1730 = vmatpush.msra.mxu0 %v1673
        %1731 = vmatpush.msra.mxu0 %v1671
        %1732 = vmatpush.msra.mxu0 %v1669
        %1733 = vmatpush.msra.mxu0 %v1667
        %1734 = vmatmul.f32.gmra.mxu0 %v540
        %v1735 = vpop.f32.mrf.mxu0
        %v1736 = vadd.f32 0.0, %v1735
        %1737 = vdwg.mxu0
        %v1738 = vadd.f32 %v1647, %v1716
        %v1739 = vadd.f32 %v1648, %v1736
        %s1740 = scalar_lea.vmem %s386, 1664 [#allocation9]
        %v1741 = vld [vmem:[%s1740] sm:$0xff]
        %v1742 = vld [vmem:[%s1740 + $0x8] sm:$0xff]
        %v1743 = vld [vmem:[%s1740 + $0x10] sm:$0xff]
        %v1744 = vld [vmem:[%s1740 + $0x18] sm:$0xff]
        %v1745 = vld [vmem:[%s1740 + $0x20] sm:$0xff]
        %v1746 = vld [vmem:[%s1740 + $0x28] sm:$0xff]
        %v1747 = vld [vmem:[%s1740 + $0x30] sm:$0xff]
        %v1748 = vld [vmem:[%s1740 + $0x38] sm:$0xff]
        %v1749 = vld [vmem:[%s1740 + $0x40] sm:$0xff]
        %v1750 = vld [vmem:[%s1740 + $0x48] sm:$0xff]
        %v1751 = vld [vmem:[%s1740 + $0x50] sm:$0xff]
        %v1752 = vld [vmem:[%s1740 + $0x58] sm:$0xff]
        %v1753 = vld [vmem:[%s1740 + $0x60] sm:$0xff]
        %v1754 = vld [vmem:[%s1740 + $0x68] sm:$0xff]
        %v1755 = vld [vmem:[%s1740 + $0x70] sm:$0xff]
        %v1756 = vld [vmem:[%s1740 + $0x78] sm:$0xff]
        %v1757 = vunpack.c.l.bf16 %v1741
        %v1758 = vunpack.c.h.bf16 %v1741
        %v1759 = vunpack.c.l.bf16 %v1742
        %v1760 = vunpack.c.h.bf16 %v1742
        %v1761 = vunpack.c.l.bf16 %v1743
        %v1762 = vunpack.c.h.bf16 %v1743
        %v1763 = vunpack.c.l.bf16 %v1744
        %v1764 = vunpack.c.h.bf16 %v1744
        %v1765 = vunpack.c.l.bf16 %v1745
        %v1766 = vunpack.c.h.bf16 %v1745
        %v1767 = vunpack.c.l.bf16 %v1746
        %v1768 = vunpack.c.h.bf16 %v1746
        %v1769 = vunpack.c.l.bf16 %v1747
        %v1770 = vunpack.c.h.bf16 %v1747
        %v1771 = vunpack.c.l.bf16 %v1748
        %v1772 = vunpack.c.h.bf16 %v1748
        %v1773 = vunpack.c.l.bf16 %v1749
        %v1774 = vunpack.c.h.bf16 %v1749
        %v1775 = vunpack.c.l.bf16 %v1750
        %v1776 = vunpack.c.h.bf16 %v1750
        %v1777 = vunpack.c.l.bf16 %v1751
        %v1778 = vunpack.c.h.bf16 %v1751
        %v1779 = vunpack.c.l.bf16 %v1752
        %v1780 = vunpack.c.h.bf16 %v1752
        %v1781 = vunpack.c.l.bf16 %v1753
        %v1782 = vunpack.c.h.bf16 %v1753
        %v1783 = vunpack.c.l.bf16 %v1754
        %v1784 = vunpack.c.h.bf16 %v1754
        %v1785 = vunpack.c.l.bf16 %v1755
        %v1786 = vunpack.c.h.bf16 %v1755
        %v1787 = vunpack.c.l.bf16 %v1756
        %v1788 = vunpack.c.h.bf16 %v1756
        %v1790 = vrot.slane %v540, 2
        %1792 = vmatpush.msra.mxu0 %v1787
        %1793 = vmatpush.msra.mxu0 %v1785
        %1794 = vmatpush.msra.mxu0 %v1783
        %1795 = vmatpush.msra.mxu0 %v1781
        %1796 = vmatpush.msra.mxu0 %v1779
        %1797 = vmatpush.msra.mxu0 %v1777
        %1798 = vmatpush.msra.mxu0 %v1775
        %1799 = vmatpush.msra.mxu0 %v1773
        %1800 = vmatpush.msra.mxu0 %v1771
        %1801 = vmatpush.msra.mxu0 %v1769
        %1802 = vmatpush.msra.mxu0 %v1767
        %1803 = vmatpush.msra.mxu0 %v1765
        %1804 = vmatpush.msra.mxu0 %v1763
        %1805 = vmatpush.msra.mxu0 %v1761
        %1806 = vmatpush.msra.mxu0 %v1759
        %1807 = vmatpush.msra.mxu0 %v1757
        %1808 = vmatmul.f32.gmra.mxu0 %v1790
        %v1809 = vpop.f32.mrf.mxu0
        %v1810 = vadd.f32 0.0, %v1809
        %1811 = vdwg.mxu0
        %1812 = vmatpush.msra.mxu0 %v1788
        %1813 = vmatpush.msra.mxu0 %v1786
        %1814 = vmatpush.msra.mxu0 %v1784
        %1815 = vmatpush.msra.mxu0 %v1782
        %1816 = vmatpush.msra.mxu0 %v1780
        %1817 = vmatpush.msra.mxu0 %v1778
        %1818 = vmatpush.msra.mxu0 %v1776
        %1819 = vmatpush.msra.mxu0 %v1774
        %1820 = vmatpush.msra.mxu0 %v1772
        %1821 = vmatpush.msra.mxu0 %v1770
        %1822 = vmatpush.msra.mxu0 %v1768
        %1823 = vmatpush.msra.mxu0 %v1766
        %1824 = vmatpush.msra.mxu0 %v1764
        %1825 = vmatpush.msra.mxu0 %v1762
        %1826 = vmatpush.msra.mxu0 %v1760
        %1827 = vmatpush.msra.mxu0 %v1758
        %1828 = vmatmul.f32.gmra.mxu0 %v1790
        %v1829 = vpop.f32.mrf.mxu0
        %v1830 = vadd.f32 0.0, %v1829
        %1831 = vdwg.mxu0
        %v1832 = vadd.f32 %v1738, %v1810
        %v1833 = vadd.f32 %v1739, %v1830
        %s1834 = scalar_lea.vmem %s386, 1792 [#allocation9]
        %v1835 = vld [vmem:[%s1834] sm:$0xff]
        %v1836 = vld [vmem:[%s1834 + $0x8] sm:$0xff]
        %v1837 = vld [vmem:[%s1834 + $0x10] sm:$0xff]
        %v1838 = vld [vmem:[%s1834 + $0x18] sm:$0xff]
        %v1839 = vld [vmem:[%s1834 + $0x20] sm:$0xff]
        %v1840 = vld [vmem:[%s1834 + $0x28] sm:$0xff]
        %v1841 = vld [vmem:[%s1834 + $0x30] sm:$0xff]
        %v1842 = vld [vmem:[%s1834 + $0x38] sm:$0xff]
        %v1843 = vld [vmem:[%s1834 + $0x40] sm:$0xff]
        %v1844 = vld [vmem:[%s1834 + $0x48] sm:$0xff]
        %v1845 = vld [vmem:[%s1834 + $0x50] sm:$0xff]
        %v1846 = vld [vmem:[%s1834 + $0x58] sm:$0xff]
        %v1847 = vld [vmem:[%s1834 + $0x60] sm:$0xff]
        %v1848 = vld [vmem:[%s1834 + $0x68] sm:$0xff]
        %v1849 = vld [vmem:[%s1834 + $0x70] sm:$0xff]
        %v1850 = vld [vmem:[%s1834 + $0x78] sm:$0xff]
        %v1851 = vunpack.c.l.bf16 %v1835
        %v1852 = vunpack.c.h.bf16 %v1835
        %v1853 = vunpack.c.l.bf16 %v1836
        %v1854 = vunpack.c.h.bf16 %v1836
        %v1855 = vunpack.c.l.bf16 %v1837
        %v1856 = vunpack.c.h.bf16 %v1837
        %v1857 = vunpack.c.l.bf16 %v1838
        %v1858 = vunpack.c.h.bf16 %v1838
        %v1859 = vunpack.c.l.bf16 %v1839
        %v1860 = vunpack.c.h.bf16 %v1839
        %v1861 = vunpack.c.l.bf16 %v1840
        %v1862 = vunpack.c.h.bf16 %v1840
        %v1863 = vunpack.c.l.bf16 %v1841
        %v1864 = vunpack.c.h.bf16 %v1841
        %v1865 = vunpack.c.l.bf16 %v1842
        %v1866 = vunpack.c.h.bf16 %v1842
        %v1867 = vunpack.c.l.bf16 %v1843
        %v1868 = vunpack.c.h.bf16 %v1843
        %v1869 = vunpack.c.l.bf16 %v1844
        %v1870 = vunpack.c.h.bf16 %v1844
        %v1871 = vunpack.c.l.bf16 %v1845
        %v1872 = vunpack.c.h.bf16 %v1845
        %v1873 = vunpack.c.l.bf16 %v1846
        %v1874 = vunpack.c.h.bf16 %v1846
        %v1875 = vunpack.c.l.bf16 %v1847
        %v1876 = vunpack.c.h.bf16 %v1847
        %v1877 = vunpack.c.l.bf16 %v1848
        %v1878 = vunpack.c.h.bf16 %v1848
        %v1879 = vunpack.c.l.bf16 %v1849
        %v1880 = vunpack.c.h.bf16 %v1849
        %v1881 = vunpack.c.l.bf16 %v1850
        %v1882 = vunpack.c.h.bf16 %v1850
        %v1883 = vrot.slane %v540, 4
        %1885 = vmatpush.msra.mxu0 %v1881
        %1886 = vmatpush.msra.mxu0 %v1879
        %1887 = vmatpush.msra.mxu0 %v1877
        %1888 = vmatpush.msra.mxu0 %v1875
        %1889 = vmatpush.msra.mxu0 %v1873
        %1890 = vmatpush.msra.mxu0 %v1871
        %1891 = vmatpush.msra.mxu0 %v1869
        %1892 = vmatpush.msra.mxu0 %v1867
        %1893 = vmatpush.msra.mxu0 %v1865
        %1894 = vmatpush.msra.mxu0 %v1863
        %1895 = vmatpush.msra.mxu0 %v1861
        %1896 = vmatpush.msra.mxu0 %v1859
        %1897 = vmatpush.msra.mxu0 %v1857
        %1898 = vmatpush.msra.mxu0 %v1855
        %1899 = vmatpush.msra.mxu0 %v1853
        %1900 = vmatpush.msra.mxu0 %v1851
        %1901 = vmatmul.f32.gmra.mxu0 %v1883
        %v1902 = vpop.f32.mrf.mxu0
        %v1903 = vadd.f32 0.0, %v1902
        %1904 = vdwg.mxu0
        %1905 = vmatpush.msra.mxu0 %v1882
        %1906 = vmatpush.msra.mxu0 %v1880
        %1907 = vmatpush.msra.mxu0 %v1878
        %1908 = vmatpush.msra.mxu0 %v1876
        %1909 = vmatpush.msra.mxu0 %v1874
        %1910 = vmatpush.msra.mxu0 %v1872
        %1911 = vmatpush.msra.mxu0 %v1870
        %1912 = vmatpush.msra.mxu0 %v1868
        %1913 = vmatpush.msra.mxu0 %v1866
        %1914 = vmatpush.msra.mxu0 %v1864
        %1915 = vmatpush.msra.mxu0 %v1862
        %1916 = vmatpush.msra.mxu0 %v1860
        %1917 = vmatpush.msra.mxu0 %v1858
        %1918 = vmatpush.msra.mxu0 %v1856
        %1919 = vmatpush.msra.mxu0 %v1854
        %1920 = vmatpush.msra.mxu0 %v1852
        %1921 = vmatmul.f32.gmra.mxu0 %v1883
        %v1922 = vpop.f32.mrf.mxu0
        %v1923 = vadd.f32 0.0, %v1922
        %1924 = vdwg.mxu0
        %v1925 = vadd.f32 %v1832, %v1903
        %v1926 = vadd.f32 %v1833, %v1923
        %s1927 = scalar_lea.vmem %s386, 1920 [#allocation9]
        %v1928 = vld [vmem:[%s1927] sm:$0xff]
        %v1929 = vld [vmem:[%s1927 + $0x8] sm:$0xff]
        %v1930 = vld [vmem:[%s1927 + $0x10] sm:$0xff]
        %v1931 = vld [vmem:[%s1927 + $0x18] sm:$0xff]
        %v1932 = vld [vmem:[%s1927 + $0x20] sm:$0xff]
        %v1933 = vld [vmem:[%s1927 + $0x28] sm:$0xff]
        %v1934 = vld [vmem:[%s1927 + $0x30] sm:$0xff]
        %v1935 = vld [vmem:[%s1927 + $0x38] sm:$0xff]
        %v1936 = vld [vmem:[%s1927 + $0x40] sm:$0xff]
        %v1937 = vld [vmem:[%s1927 + $0x48] sm:$0xff]
        %v1938 = vld [vmem:[%s1927 + $0x50] sm:$0xff]
        %v1939 = vld [vmem:[%s1927 + $0x58] sm:$0xff]
        %v1940 = vld [vmem:[%s1927 + $0x60] sm:$0xff]
        %v1941 = vld [vmem:[%s1927 + $0x68] sm:$0xff]
        %v1942 = vld [vmem:[%s1927 + $0x70] sm:$0xff]
        %v1943 = vld [vmem:[%s1927 + $0x78] sm:$0xff]
        %v1944 = vunpack.c.l.bf16 %v1928
        %v1945 = vunpack.c.h.bf16 %v1928
        %v1946 = vunpack.c.l.bf16 %v1929
        %v1947 = vunpack.c.h.bf16 %v1929
        %v1948 = vunpack.c.l.bf16 %v1930
        %v1949 = vunpack.c.h.bf16 %v1930
        %v1950 = vunpack.c.l.bf16 %v1931
        %v1951 = vunpack.c.h.bf16 %v1931
        %v1952 = vunpack.c.l.bf16 %v1932
        %v1953 = vunpack.c.h.bf16 %v1932
        %v1954 = vunpack.c.l.bf16 %v1933
        %v1955 = vunpack.c.h.bf16 %v1933
        %v1956 = vunpack.c.l.bf16 %v1934
        %v1957 = vunpack.c.h.bf16 %v1934
        %v1958 = vunpack.c.l.bf16 %v1935
        %v1959 = vunpack.c.h.bf16 %v1935
        %v1960 = vunpack.c.l.bf16 %v1936
        %v1961 = vunpack.c.h.bf16 %v1936
        %v1962 = vunpack.c.l.bf16 %v1937
        %v1963 = vunpack.c.h.bf16 %v1937
        %v1964 = vunpack.c.l.bf16 %v1938
        %v1965 = vunpack.c.h.bf16 %v1938
        %v1966 = vunpack.c.l.bf16 %v1939
        %v1967 = vunpack.c.h.bf16 %v1939
        %v1968 = vunpack.c.l.bf16 %v1940
        %v1969 = vunpack.c.h.bf16 %v1940
        %v1970 = vunpack.c.l.bf16 %v1941
        %v1971 = vunpack.c.h.bf16 %v1941
        %v1972 = vunpack.c.l.bf16 %v1942
        %v1973 = vunpack.c.h.bf16 %v1942
        %v1974 = vunpack.c.l.bf16 %v1943
        %v1975 = vunpack.c.h.bf16 %v1943
        %v1976 = vrot.slane %v540, 6
        %1978 = vmatpush.msra.mxu0 %v1974
        %1979 = vmatpush.msra.mxu0 %v1972
        %1980 = vmatpush.msra.mxu0 %v1970
        %1981 = vmatpush.msra.mxu0 %v1968
        %1982 = vmatpush.msra.mxu0 %v1966
        %1983 = vmatpush.msra.mxu0 %v1964
        %1984 = vmatpush.msra.mxu0 %v1962
        %1985 = vmatpush.msra.mxu0 %v1960
        %1986 = vmatpush.msra.mxu0 %v1958
        %1987 = vmatpush.msra.mxu0 %v1956
        %1988 = vmatpush.msra.mxu0 %v1954
        %1989 = vmatpush.msra.mxu0 %v1952
        %1990 = vmatpush.msra.mxu0 %v1950
        %1991 = vmatpush.msra.mxu0 %v1948
        %1992 = vmatpush.msra.mxu0 %v1946
        %1993 = vmatpush.msra.mxu0 %v1944
        %1994 = vmatmul.f32.gmra.mxu0 %v1976
        %v1995 = vpop.f32.mrf.mxu0
        %v1996 = vadd.f32 0.0, %v1995
        %1997 = vdwg.mxu0
        %1998 = vmatpush.msra.mxu0 %v1975
        %1999 = vmatpush.msra.mxu0 %v1973
        %2000 = vmatpush.msra.mxu0 %v1971
        %2001 = vmatpush.msra.mxu0 %v1969
        %2002 = vmatpush.msra.mxu0 %v1967
        %2003 = vmatpush.msra.mxu0 %v1965
        %2004 = vmatpush.msra.mxu0 %v1963
        %2005 = vmatpush.msra.mxu0 %v1961
        %2006 = vmatpush.msra.mxu0 %v1959
        %2007 = vmatpush.msra.mxu0 %v1957
        %2008 = vmatpush.msra.mxu0 %v1955
        %2009 = vmatpush.msra.mxu0 %v1953
        %2010 = vmatpush.msra.mxu0 %v1951
        %2011 = vmatpush.msra.mxu0 %v1949
        %2012 = vmatpush.msra.mxu0 %v1947
        %2013 = vmatpush.msra.mxu0 %v1945
        %2014 = vmatmul.f32.gmra.mxu0 %v1976
        %v2015 = vpop.f32.mrf.mxu0
        %v2016 = vadd.f32 0.0, %v2015
        %2017 = vdwg.mxu0
        %v2018 = vadd.f32 %v1925, %v1996
        %v2019 = vadd.f32 %v1926, %v2016
        %v2020 = vld [vmem:[%s396] sm:$0x3]
        %v2022 = vperm.slane %v2020, 0
        %v2023 = vperm.slane %v2020, 1
        %v2026 = vadd.f32 %v2018, %v2022
        %v2027 = vadd.f32 %v2019, %v2023
        %v2028 = vmax.f32 %v2026, 0.0
        %v2029 = vmax.f32 %v2027, 0.0
        %v2030 = vld [vmem:[#allocation15] sm:$0x3]
        %v2031 = vld [vmem:[%s406] sm:$0xf]
        %v2032 = vld [vmem:[%s406 + $0x4] sm:$0xf]
        %v2033 = vld [vmem:[%s406 + $0x8] sm:$0xf]
        %v2034 = vld [vmem:[%s406 + $0xc] sm:$0xf]
        %v2035 = vld [vmem:[%s406 + $0x10] sm:$0xf]
        %v2036 = vld [vmem:[%s406 + $0x14] sm:$0xf]
        %v2037 = vld [vmem:[%s406 + $0x18] sm:$0xf]
        %v2038 = vld [vmem:[%s406 + $0x1c] sm:$0xf]
        %v2039 = vld [vmem:[%s406 + $0x20] sm:$0xf]
        %v2040 = vld [vmem:[%s406 + $0x24] sm:$0xf]
        %v2041 = vld [vmem:[%s406 + $0x28] sm:$0xf]
        %v2042 = vld [vmem:[%s406 + $0x2c] sm:$0xf]
        %v2043 = vld [vmem:[%s406 + $0x30] sm:$0xf]
        %v2044 = vld [vmem:[%s406 + $0x34] sm:$0xf]
        %v2045 = vld [vmem:[%s406 + $0x38] sm:$0xf]
        %v2046 = vld [vmem:[%s406 + $0x3c] sm:$0xf]
        %v2047 = vld [vmem:[%s406 + $0x40] sm:$0xf]
        %v2048 = vld [vmem:[%s406 + $0x44] sm:$0xf]
        %v2049 = vld [vmem:[%s406 + $0x48] sm:$0xf]
        %v2050 = vld [vmem:[%s406 + $0x4c] sm:$0xf]
        %v2051 = vld [vmem:[%s406 + $0x50] sm:$0xf]
        %v2052 = vld [vmem:[%s406 + $0x54] sm:$0xf]
        %v2053 = vld [vmem:[%s406 + $0x58] sm:$0xf]
        %v2054 = vld [vmem:[%s406 + $0x5c] sm:$0xf]
        %v2055 = vld [vmem:[%s406 + $0x60] sm:$0xf]
        %v2056 = vld [vmem:[%s406 + $0x64] sm:$0xf]
        %v2057 = vld [vmem:[%s406 + $0x68] sm:$0xf]
        %v2058 = vld [vmem:[%s406 + $0x6c] sm:$0xf]
        %v2059 = vld [vmem:[%s406 + $0x70] sm:$0xf]
        %v2060 = vld [vmem:[%s406 + $0x74] sm:$0xf]
        %v2061 = vld [vmem:[%s406 + $0x78] sm:$0xf]
        %v2062 = vld [vmem:[%s406 + $0x7c] sm:$0xf]
        %v2063 = vunpack.c.l.bf16 %v2031
        %v2064 = vunpack.c.l.bf16 %v2032
        %v2065 = vunpack.c.l.bf16 %v2033
        %v2066 = vunpack.c.l.bf16 %v2034
        %v2067 = vunpack.c.l.bf16 %v2035
        %v2068 = vunpack.c.l.bf16 %v2036
        %v2069 = vunpack.c.l.bf16 %v2037
        %v2070 = vunpack.c.l.bf16 %v2038
        %v2071 = vunpack.c.l.bf16 %v2039
        %v2072 = vunpack.c.l.bf16 %v2040
        %v2073 = vunpack.c.l.bf16 %v2041
        %v2074 = vunpack.c.l.bf16 %v2042
        %v2075 = vunpack.c.l.bf16 %v2043
        %v2076 = vunpack.c.l.bf16 %v2044
        %v2077 = vunpack.c.l.bf16 %v2045
        %v2078 = vunpack.c.l.bf16 %v2046
        %v2079 = vunpack.c.l.bf16 %v2047
        %v2080 = vunpack.c.l.bf16 %v2048
        %v2081 = vunpack.c.l.bf16 %v2049
        %v2082 = vunpack.c.l.bf16 %v2050
        %v2083 = vunpack.c.l.bf16 %v2051
        %v2084 = vunpack.c.l.bf16 %v2052
        %v2085 = vunpack.c.l.bf16 %v2053
        %v2086 = vunpack.c.l.bf16 %v2054
        %v2087 = vunpack.c.l.bf16 %v2055
        %v2088 = vunpack.c.l.bf16 %v2056
        %v2089 = vunpack.c.l.bf16 %v2057
        %v2090 = vunpack.c.l.bf16 %v2058
        %v2091 = vunpack.c.l.bf16 %v2059
        %v2092 = vunpack.c.l.bf16 %v2060
        %v2093 = vunpack.c.l.bf16 %v2061
        %v2094 = vunpack.c.l.bf16 %v2062
        %2095 = vmatpush.msra.mxu0 %v2078
        %2096 = vmatpush.msra.mxu0 %v2077
        %2097 = vmatpush.msra.mxu0 %v2076
        %2098 = vmatpush.msra.mxu0 %v2075
        %2099 = vmatpush.msra.mxu0 %v2074
        %2100 = vmatpush.msra.mxu0 %v2073
        %2101 = vmatpush.msra.mxu0 %v2072
        %2102 = vmatpush.msra.mxu0 %v2071
        %2103 = vmatpush.msra.mxu0 %v2070
        %2104 = vmatpush.msra.mxu0 %v2069
        %2105 = vmatpush.msra.mxu0 %v2068
        %2106 = vmatpush.msra.mxu0 %v2067
        %2107 = vmatpush.msra.mxu0 %v2066
        %2108 = vmatpush.msra.mxu0 %v2065
        %2109 = vmatpush.msra.mxu0 %v2064
        %2110 = vmatpush.msra.mxu0 %v2063
        %2111 = vmatmul.f32.gmra.mxu0 %v2028
        %v2112 = vpop.f32.mrf.mxu0
        %v2113 = vadd.f32 0.0, %v2112
        %2114 = vdwg.mxu0
        %2115 = vmatpush.msra.mxu0 %v2094
        %2116 = vmatpush.msra.mxu0 %v2093
        %2117 = vmatpush.msra.mxu0 %v2092
        %2118 = vmatpush.msra.mxu0 %v2091
        %2119 = vmatpush.msra.mxu0 %v2090
        %2120 = vmatpush.msra.mxu0 %v2089
        %2121 = vmatpush.msra.mxu0 %v2088
        %2122 = vmatpush.msra.mxu0 %v2087
        %2123 = vmatpush.msra.mxu0 %v2086
        %2124 = vmatpush.msra.mxu0 %v2085
        %2125 = vmatpush.msra.mxu0 %v2084
        %2126 = vmatpush.msra.mxu0 %v2083
        %2127 = vmatpush.msra.mxu0 %v2082
        %2128 = vmatpush.msra.mxu0 %v2081
        %2129 = vmatpush.msra.mxu0 %v2080
        %2130 = vmatpush.msra.mxu0 %v2079
        %2131 = vmatmul.f32.gmra.mxu0 %v2029
        %v2132 = vpop.f32.mrf.mxu0
        %v2133 = vadd.f32 %v2113, %v2132
        %2134 = vdwg.mxu0
        %v2135 = vadd.f32 %v2030, %v2133
        %2136 = vst [vmem:[#allocation15] sm:$0x3] %v2135
        // Predicated region
        $region85: #{tpu_custom_call.1} parent=51 // pred_check
          %p2137 = pneg %p224
        $region86: #{tpu_custom_call.1} parent=51 // pred_check_branch
          %2139 = sbr.rel (%p2137) target = $region88
        $region87: #{tpu_custom_call.1} parent=51 // pred_region
          %2141 = vsyncadd [#allocation5], 0
          %s2143 = sshll.u32 [#allocation15], 4
          %s2144 = int_to_ptr.vmem [resolvable:$true] %s2143
          %s2145 = sshll.u32 %s8, 4
          %s2146 = int_to_ptr.hbm [resolvable:$true] %s2145
          %2148 = dma.vmem_to_hbm [thread:$0]  %s2144, 32, %s2146, [#allocation5]
        $region88: #{tpu_custom_call.1} parent=51 // pred_fallthru
          _
        // Predicated region
        $region89: #{tpu_custom_call.1} parent=51 // pred_check
          %p2149 = pneg %p224
        $region90: #{tpu_custom_call.1} parent=51 // pred_check_branch
          %2151 = sbr.rel (%p2149) target = $region92
        $region91: #{tpu_custom_call.1} parent=51 // pred_region
          %2153 = dma.done [#allocation5], 32
        $region92: #{tpu_custom_call.1} parent=51 // pred_fallthru
          _
      $region52: #{tpu_custom_call.1} parent=5 // pred_fallthru
        _
      %p2154 = scmp.le.s32.totalorder 2, %s23
      // Predicated region
      $region93: #{tpu_custom_call.1} parent=5 // pred_check
        %p2155 = pneg %p2154
      $region94: #{tpu_custom_call.1} parent=5 // pred_check_branch
        %2157 = sbr.rel (%p2155) target = $region96
      $region95: #{tpu_custom_call.1} parent=5 // pred_region
        %s2158 = ssub.s32 %s23, 2
      $region96: #{tpu_custom_call.1} parent=5 // pred_fallthru
        _
    $region6: #{tpu_custom_call.1} parent=1 // loop_footer
      %s27 = sadd.s32 1, %s23
    $region7: #{tpu_custom_call.1} parent=1 // loop_footer_branch
      %22 = sbr.rel target = $region3
    $region8: #{tpu_custom_call.1} parent=1 // loop_exit
      _
    %2159 = vsyncpa [#allocation4], 1
    %s2160 = scalar_lea.sflag [#allocation4], 1
    %2161 = vsyncpa %s2160, 1
    %2162 = vsyncpa [#allocation7], 1
    %2163 = vsyncpa [#allocation10], 1
    %s2164 = scalar_lea.sflag [#allocation10], 1
    %2165 = vsyncpa %s2164, 1
    %2166 = vsyncpa [#allocation13], 1
    %s2167 = scalar_lea.sflag [#allocation13], 1
    %2168 = vsyncpa %s2167, 1
    %2169 = vsyncpa [#allocation5], 1
    %s2170 = scalar_lea.sflag [#allocation5], 1
    %2171 = vsyncpa %s2170, 1

</llo_original>
